<compile_context>
chip_gen: v6e
topology: v6e:2x2x1
jax: 0.10.0
libtpu: 0.0.40
codegen_flags: <defaults>
</compile_context>

<pallas_src>
import functools

import jax
import jax.numpy as jnp
from jax import lax
from jax.experimental import pallas as pl
from jax.experimental.pallas import tpu as pltpu

EPS = 1e-5  # PyTorch BatchNorm default eps


# ----------------------------------------------------------------------------- kernel
def make_robust_kernel(num_layers, T, BP, D, H):
    """Fused forward kernel for fixed static sizes.

    BP = sublane-padded batch (multiple of 8); gates packed as GP = 4*H lanes
    (exactly one 128-lane vreg when H == 32).
    """
    GP = 4 * H

    def kernel(*refs):
        # ---- unpack refs (order must match wrapper) ----
        x_ref = refs[0]            # (T*BP, D)   raw input, time-major flattened, f32
        wih0_ref = refs[1]         # (D, GP)     input-BN folded, f32 (one-shot matmul)
        b0_ref = refs[2]           # (1, GP)     f32
        whh0_ref = refs[3]         # (H, GP)     bf16 (recurrent path)
        idx = 4
        layer_refs = []
        for _ in range(1, num_layers):
            layer_refs.append((refs[idx], refs[idx + 1]))  # stacked [wih;whh] bf16, bias f32
            idx += 2
        fc1_w_ref = refs[idx]      # (H, H2P)    lstm_bn folded, f32
        fc1_b_ref = refs[idx + 1]  # (1, H2P)    f32
        fc2_w_ref = refs[idx + 2]  # (H2P, OP)   bn1 folded, f32
        fc2_b_ref = refs[idx + 3]  # (1, OP)     f32
        out_ref = refs[idx + 4]    # (BP, OP)
        xg_ref = refs[idx + 5]     # scratch: (T*BP, GP) hoisted layer-0 input projection

        # ---- hoisted layer-0 input projection: one MXU matmul, off the serial path ----
        xg_ref[...] = (
            jnp.dot(x_ref[...], wih0_ref[...], preferred_element_type=jnp.float32)
            + b0_ref[...]
        )

        # ---- hoist recurrent weights / bias broadcasts out of the unrolled time loop ----
        # NOTE: explicit MXU RHS staging (pltpu.matmul_push_rhs) intentionally not used;
        # the hoisted bf16 weights (< 25 KiB total) stay vreg/VMEM-resident, capturing most
        # of the "don't re-stream the RHS every step" benefit with far less lowering risk.
        whh0 = whh0_ref[...]                                         # (H, GP)  bf16
        w_stk = [w_ref[...] for (w_ref, _) in layer_refs]            # (2H, GP) bf16
        b_stk = [jnp.broadcast_to(b_ref[...], (BP, GP))              # (BP, GP) f32
                 for (_, b_ref) in layer_refs]

        def lstm_cell(gates, c_prev):
            # gates: (BP, GP) packed [i|f|g|o]; one sigmoid pass over the whole vreg,
            # one tanh for g, one tanh for c (gate extraction rides the XLU slot).
            sig = jax.nn.sigmoid(gates)
            g = jnp.tanh(gates[:, 2 * H:3 * H])
            i = sig[:, 0 * H:1 * H]
            f = sig[:, 1 * H:2 * H]
            o = sig[:, 3 * H:4 * H]
            c = f * c_prev + i * g
            h = o * jnp.tanh(c)
            return h, c

        h0 = tuple(jnp.zeros((BP, H), jnp.float32) for _ in range(num_layers))
        c0 = tuple(jnp.zeros((BP, H), jnp.float32) for _ in range(num_layers))

        def step(t, carry):
            hs, cs = carry
            new_hs, new_cs = [], []
            # layer 0: only the (bf16) recurrent matmul is on the serial path; the
            # per-step xg read is an (8,128)-tile-aligned slice (BP is a multiple of 8).
            off = pl.multiple_of(t * BP, BP)
            gates0 = xg_ref[pl.ds(off, BP), :] + jnp.dot(
                hs[0].astype(jnp.bfloat16), whh0, preferred_element_type=jnp.float32)
            h, c = lstm_cell(gates0, cs[0])
            new_hs.append(h)
            new_cs.append(c)
            for l in range(1, num_layers):
                # single fused K=2H matmul: [h_below | h_prev] @ [wih_l ; whh_l]
                hcat = jnp.concatenate([new_hs[l - 1], hs[l]], axis=1).astype(jnp.bfloat16)
                gates = jnp.dot(hcat, w_stk[l - 1],
                                preferred_element_type=jnp.float32) + b_stk[l - 1]
                h, c = lstm_cell(gates, cs[l])
                new_hs.append(h)
                new_cs.append(c)
            return tuple(new_hs), tuple(new_cs)

        # fully unrolled: T is small and static
        hs, _ = lax.fori_loop(0, T, step, (h0, c0), unroll=True)
        last = hs[-1]                       # (BP, H) f32 == lstm_out[:, -1]

        # ---- (lstm_bn folded) fc1 + relu -> (bn1 folded, dropout=identity) fc2 ----
        # One-shot tail, kept in f32 (off the serial critical path).
        h1 = jnp.dot(last, fc1_w_ref[...], preferred_element_type=jnp.float32) + fc1_b_ref[...]
        h1 = jnp.maximum(h1, 0.0)
        logits = jnp.dot(h1, fc2_w_ref[...], preferred_element_type=jnp.float32) + fc2_b_ref[...]
        out_ref[...] = logits.astype(out_ref.dtype)

    return kernel


def _full_spec(shape):
    n = len(shape)
    return pl.BlockSpec(shape, lambda i, _n=n: (0,) * _n)


# ----------------------------------------------------------------------------- wrapper
def _bn_affine(bn):
    """bn: (4, dim) = [gamma, beta, mean, var] -> per-feature (scale, shift) vectors."""
    gamma, beta, mean, var = bn[0], bn[1], bn[2], bn[3]
    scale = gamma * lax.rsqrt(var + EPS)
    shift = beta - mean * scale
    return scale, shift


def robust_model_forward(x_btd, params, *, num_layers, hidden_dim):
    """x_btd: (B, T, D) float32 (PyTorch batch_first layout). Returns (B, 2) logits."""
    B, T, D = x_btd.shape
    H = hidden_dim
    H2 = H // 2
    GP = 4 * H                               # packed gates (one 128-lane vreg for H=32)
    BP = ((max(B, 8) + 7) // 8) * 8          # sublane-pad batch to a multiple of 8
    H2P = ((H2 + 127) // 128) * 128          # lane-pad fc1 output
    OP = 128                                 # lane-dense output block (sliced to 2 at the end)

    # time-major, batch padded to BP, flattened: row index = t*BP + b
    x_tbd = jnp.transpose(x_btd, (1, 0, 2)).astype(jnp.float32)      # (T, B, D)
    x_tbd = jnp.pad(x_tbd, ((0, 0), (0, BP - B), (0, 0)))
    x2d = x_tbd.reshape(T * BP, D)

    def pad_rows(w, kp):
        return jnp.pad(w, ((0, kp - w.shape[0]), (0, 0)))

    def pad_cols(w, npad):
        return jnp.pad(w, ((0, 0), (0, npad - w.shape[1])))

    # -- fold input BN into layer-0 input projection --
    in_scale, in_shift = _bn_affine(params["in_bn"])                 # (D,), (D,)
    wih0, whh0, b0 = params["lstm"][0]                               # (D,4H), (H,4H), (1,4H)
    wih0_f = in_scale[:, None] * wih0
    b0_f = b0 + (in_shift @ wih0)[None, :]

    args = [
        x2d,
        wih0_f.astype(jnp.float32),          # (D, GP)  f32 (one-shot)
        b0_f.astype(jnp.float32),            # (1, GP)
        whh0.astype(jnp.bfloat16),           # (H, GP)  bf16 (recurrent path)
    ]
    for l in range(1, num_layers):
        wih, whh, b = params["lstm"][l]
        w_stk = jnp.concatenate([wih, whh], axis=0).astype(jnp.bfloat16)   # (2H, GP)
        args += [w_stk, b.astype(jnp.float32)]

    # -- fold lstm_bn into fc1 and bn1 into fc2 --
    s, sh = _bn_affine(params["lstm_bn"])
    fc1_wf = s[:, None] * params["fc1_w"]
    fc1_bf = params["fc1_b"] + (sh @ params["fc1_w"])[None, :]
    s1, sh1 = _bn_affine(params["bn1"])
    fc2_wf = s1[:, None] * params["fc2_w"]
    fc2_bf = params["fc2_b"] + (sh1 @ params["fc2_w"])[None, :]
    args += [
        pad_cols(fc1_wf, H2P).astype(jnp.float32),                  # (H, H2P)
        pad_cols(fc1_bf, H2P).astype(jnp.float32),                  # (1, H2P)
        pad_cols(pad_rows(fc2_wf, H2P), OP).astype(jnp.float32),    # (H2P, OP)
        pad_cols(fc2_bf, OP).astype(jnp.float32),                   # (1, OP)
    ]

    # TODO(synk): for batched inference on v7x, add a leading batch grid axis marked
    #             "parallel" so the two TensorCores split the batch (no effect at B=2).
    kernel = make_robust_kernel(num_layers, T, BP, D, H)
    out = pl.pallas_call(
        kernel,
        out_shape=jax.ShapeDtypeStruct((BP, OP), jnp.float32),
        grid=(1,),
        in_specs=[_full_spec(a.shape) for a in args],
        out_specs=_full_spec((BP, OP)),
        scratch_shapes=[pltpu.VMEM((T * BP, GP), jnp.float32)],
        compiler_params=pltpu.CompilerParams(dimension_semantics=("arbitrary",)),
    )(*args)
    return out[:B, :2]


# ----------------------------------------------------------------------------- reference
def robust_model_reference(x_btd, params, *, num_layers, hidden_dim):
    """Pure-JAX eval-mode reference with identical semantics (for correctness check)."""
    B, T, D = x_btd.shape
    H = hidden_dim
    dot = functools.partial(jnp.dot, precision=lax.Precision.HIGHEST)

    def bn_apply(x, bn):
        gamma, beta, mean, var = bn[0], bn[1], bn[2], bn[3]
        return (x - mean) * (gamma * lax.rsqrt(var + EPS)) + beta

    x = bn_apply(x_btd.reshape(-1, D), params["in_bn"]).reshape(B, T, D)
    hs = [jnp.zeros((B, H), jnp.float32) for _ in range(num_layers)]
    cs = [jnp.zeros((B, H), jnp.float32) for _ in range(num_layers)]
    for t in range(T):
        inp = x[:, t]
        for l in range(num_layers):
            wih, whh, b = params["lstm"][l]
            g = dot(inp, wih) + dot(hs[l], whh) + b
            i = jax.nn.sigmoid(g[:, 0 * H:1 * H])
            f = jax.nn.sigmoid(g[:, 1 * H:2 * H])
            gg = jnp.tanh(g[:, 2 * H:3 * H])
            o = jax.nn.sigmoid(g[:, 3 * H:4 * H])
            cs[l] = f * cs[l] + i * gg
            hs[l] = o * jnp.tanh(cs[l])
            inp = hs[l]
    last = bn_apply(hs[-1], params["lstm_bn"])
    h1 = jnp.maximum(dot(last, params["fc1_w"]) + params["fc1_b"], 0.0)
    h1 = bn_apply(h1, params["bn1"])
    return dot(h1, params["fc2_w"]) + params["fc2_b"]


# ----------------------------------------------------------------------------- params
def init_params(key, D, H, num_layers):
    """Deterministic synthetic parameters (shapes match the PyTorch module)."""
    H2 = H // 2
    keys = iter(jax.random.split(key, 64))

    def nrm(shape, scale=0.1):
        return scale * jax.random.normal(next(keys), shape, jnp.float32)

    def bn(dim):
        gamma = 1.0 + nrm((dim,))
        beta = nrm((dim,))
        mean = nrm((dim,))
        var = 0.5 + jax.random.uniform(next(keys), (dim,), jnp.float32)  # > 0
        return jnp.stack([gamma, beta, mean, var])            # (4, dim)

    params = {"in_bn": bn(D)}
    lstm = []
    for l in range(num_layers):
        din = D if l == 0 else H
        wih = nrm((din, 4 * H))          # = weight_ih_l{l}.T
        whh = nrm((H, 4 * H))            # = weight_hh_l{l}.T
        b_ih = nrm((4 * H,))
        b_hh = nrm((4 * H,))
        lstm.append((wih, whh, (b_ih + b_hh).reshape(1, 4 * H)))
    params["lstm"] = lstm
    params["lstm_bn"] = bn(H)
    params["fc1_w"] = nrm((H, H2))       # = fc1.weight.T
    params["fc1_b"] = nrm((H2,)).reshape(1, H2)
    params["bn1"] = bn(H2)
    params["fc2_w"] = nrm((H2, 2))       # = fc2.weight.T
    params["fc2_b"] = nrm((2,)).reshape(1, 2)
    return params


if __name__ == "__main__":
    # Config implied by the module: input_dim=5, seq_len=history_length,
    # hidden_dim, num_layers.  Small deterministic instantiation:
    B, T, D = 2, 8, 5          # batch, history_length, input_dim
    H, L = 32, 2               # hidden_dim, num_layers

    key = jax.random.PRNGKey(0)
    kx, kp = jax.random.split(key)
    x = jax.random.normal(kx, (B, T, D), jnp.float32)
    params = init_params(kp, D, H, L)

    fwd = jax.jit(functools.partial(robust_model_forward, num_layers=L, hidden_dim=H))
    logits = fwd(x, params)
    jax.block_until_ready(logits)
    assert logits.shape == (B, 2) and logits.dtype == jnp.float32

    ref = jax.jit(functools.partial(robust_model_reference, num_layers=L, hidden_dim=H))(x, params)
    err = float(jnp.max(jnp.abs(logits - ref)))
    assert err < 5e-3, f"kernel/reference mismatch: max abs err = {err}"

    print("KERNEL_OK")
</pallas_src>

<mosaic_0001>
module attributes {stable_mosaic.version = 11 : i64} {
  func.func @kernel(%arg0: i32, %arg1: memref<64x5xf32, #tpu.memory_space<vmem>>, %arg2: memref<5x128xf32, #tpu.memory_space<vmem>>, %arg3: memref<1x128xf32, #tpu.memory_space<vmem>>, %arg4: memref<32x128xbf16, #tpu.memory_space<vmem>>, %arg5: memref<64x128xbf16, #tpu.memory_space<vmem>>, %arg6: memref<1x128xf32, #tpu.memory_space<vmem>>, %arg7: memref<32x128xf32, #tpu.memory_space<vmem>>, %arg8: memref<1x128xf32, #tpu.memory_space<vmem>>, %arg9: memref<128x128xf32, #tpu.memory_space<vmem>>, %arg10: memref<1x128xf32, #tpu.memory_space<vmem>>, %arg11: memref<8x128xf32, #tpu.memory_space<vmem>>, %arg12: memref<64x128xf32, #tpu.memory_space<vmem>>) attributes {dimension_semantics = [#tpu.dimension_semantics<arbitrary>], iteration_bounds = array<i64: 1>, scalar_prefetch = 0 : i64, scratch_operands = 1 : i64, tpu.core_type = #tpu.core_type<tc>, window_params = [{pipeline_mode = #tpu.pipeline_mode<synchronous>, transform_indices = @transform_0, window_bounds = array<i64: 64, 5>}, {pipeline_mode = #tpu.pipeline_mode<synchronous>, transform_indices = @transform_1, window_bounds = array<i64: 5, 128>}, {pipeline_mode = #tpu.pipeline_mode<synchronous>, transform_indices = @transform_2, window_bounds = array<i64: 1, 128>}, {pipeline_mode = #tpu.pipeline_mode<synchronous>, transform_indices = @transform_3, window_bounds = array<i64: 32, 128>}, {pipeline_mode = #tpu.pipeline_mode<synchronous>, transform_indices = @transform_4, window_bounds = array<i64: 64, 128>}, {pipeline_mode = #tpu.pipeline_mode<synchronous>, transform_indices = @transform_5, window_bounds = array<i64: 1, 128>}, {pipeline_mode = #tpu.pipeline_mode<synchronous>, transform_indices = @transform_6, window_bounds = array<i64: 32, 128>}, {pipeline_mode = #tpu.pipeline_mode<synchronous>, transform_indices = @transform_7, window_bounds = array<i64: 1, 128>}, {pipeline_mode = #tpu.pipeline_mode<synchronous>, transform_indices = @transform_8, window_bounds = array<i64: 128, 128>}, {pipeline_mode = #tpu.pipeline_mode<synchronous>, transform_indices = @transform_9, window_bounds = array<i64: 1, 128>}, {pipeline_mode = #tpu.pipeline_mode<synchronous>, transform_indices = @transform_10, window_bounds = array<i64: 8, 128>}]} {
    %c0 = arith.constant 0 : index
    %c0_0 = arith.constant 0 : index
    %0 = vector.load %arg1[%c0, %c0_0] : memref<64x5xf32, #tpu.memory_space<vmem>>, vector<64x5xf32>
    %c0_1 = arith.constant 0 : index
    %c0_2 = arith.constant 0 : index
    %1 = vector.load %arg2[%c0_1, %c0_2] : memref<5x128xf32, #tpu.memory_space<vmem>>, vector<5x128xf32>
    %cst = arith.constant dense<0.000000e+00> : vector<64x128xf32>
    %2 = tpu.matmul %0, %1, %cst {dimension_numbers = #tpu.dot_dimension_numbers<[1], [0], [0], [1], [0, 0, 1, 1], [], []>} : vector<64x5xf32>, vector<5x128xf32>, vector<64x128xf32> -> vector<64x128xf32>
    %c0_3 = arith.constant 0 : index
    %c0_4 = arith.constant 0 : index
    %3 = vector.load %arg3[%c0_3, %c0_4] : memref<1x128xf32, #tpu.memory_space<vmem>>, vector<1x128xf32>
    %4 = vector.broadcast %3 : vector<1x128xf32> to vector<64x128xf32>
    %5 = arith.addf %2, %4 : vector<64x128xf32>
    %c0_5 = arith.constant 0 : index
    %c0_6 = arith.constant 0 : index
    %6 = vector.load %arg12[%c0_5, %c0_6] : memref<64x128xf32, #tpu.memory_space<vmem>>, vector<64x128xf32>
    tpu.vector_store %arg12[%c0_5, %c0_6], %5 {strides = array<i32>} : memref<64x128xf32, #tpu.memory_space<vmem>>, vector<64x128xf32>,
    %c0_7 = arith.constant 0 : index
    %c0_8 = arith.constant 0 : index
    %7 = vector.load %arg4[%c0_7, %c0_8] : memref<32x128xbf16, #tpu.memory_space<vmem>>, vector<32x128xbf16>
    %c0_9 = arith.constant 0 : index
    %c0_10 = arith.constant 0 : index
    %8 = vector.load %arg5[%c0_9, %c0_10] : memref<64x128xbf16, #tpu.memory_space<vmem>>, vector<64x128xbf16>
    %c0_11 = arith.constant 0 : index
    %c0_12 = arith.constant 0 : index
    %9 = vector.load %arg6[%c0_11, %c0_12] : memref<1x128xf32, #tpu.memory_space<vmem>>, vector<1x128xf32>
    %10 = vector.shape_cast %9 : vector<1x128xf32> to vector<1x128xf32>
    %11 = vector.broadcast %10 : vector<1x128xf32> to vector<8x128xf32>
    %cst_13 = arith.constant 0.000000e+00 : f32
    %12 = vector.broadcast %cst_13 : f32 to vector<8x32xf32>
    %cst_14 = arith.constant 0.000000e+00 : f32
    %13 = vector.broadcast %cst_14 : f32 to vector<8x32xf32>
    %cst_15 = arith.constant 0.000000e+00 : f32
    %14 = vector.broadcast %cst_15 : f32 to vector<8x32xf32>
    %cst_16 = arith.constant 0.000000e+00 : f32
    %15 = vector.broadcast %cst_16 : f32 to vector<8x32xf32>
    %c0_i32 = arith.constant 0 : i32
    %c8_i32 = arith.constant 8 : i32
    %16 = arith.muli %c0_i32, %c8_i32 : i32
    %17 = tpu.assume_multiple %16, 8 : i32
    %18 = arith.index_cast %17 : i32 to index
    %c0_17 = arith.constant 0 : index
    %19 = vector.load %arg12[%18, %c0_17] : memref<64x128xf32, #tpu.memory_space<vmem>>, vector<8x128xf32>
    %20 = arith.truncf %12 : vector<8x32xf32> to vector<8x32xbf16>
    %cst_18 = arith.constant dense<0.000000e+00> : vector<8x128xf32>
    %21 = tpu.matmul %20, %7, %cst_18 {dimension_numbers = #tpu.dot_dimension_numbers<[1], [0], [0], [1], [0, 0, 1, 1], [], []>} : vector<8x32xbf16>, vector<32x128xbf16>, vector<8x128xf32> -> vector<8x128xf32>
    %22 = arith.addf %19, %21 : vector<8x128xf32>
    %23 = arith.negf %22 : vector<8x128xf32>
    %24 = math.exp %23 : vector<8x128xf32>
    %cst_19 = arith.constant 1.000000e+00 : f32
    %25 = vector.broadcast %cst_19 : f32 to vector<8x128xf32>
    %26 = arith.addf %25, %24 : vector<8x128xf32>
    %27 = arith.divf %25, %26 : vector<8x128xf32>
    %28 = vector.extract_strided_slice %22 {offsets = [0, 64], sizes = [8, 32], strides = [1, 1]} : vector<8x128xf32> to vector<8x32xf32>
    %29 = math.tanh %28 : vector<8x32xf32>
    %30 = vector.extract_strided_slice %27 {offsets = [0, 0], sizes = [8, 32], strides = [1, 1]} : vector<8x128xf32> to vector<8x32xf32>
    %31 = vector.extract_strided_slice %27 {offsets = [0, 32], sizes = [8, 32], strides = [1, 1]} : vector<8x128xf32> to vector<8x32xf32>
    %32 = vector.extract_strided_slice %27 {offsets = [0, 96], sizes = [8, 32], strides = [1, 1]} : vector<8x128xf32> to vector<8x32xf32>
    %33 = arith.mulf %31, %14 : vector<8x32xf32>
    %34 = arith.mulf %30, %29 : vector<8x32xf32>
    %35 = arith.addf %33, %34 : vector<8x32xf32>
    %36 = math.tanh %35 : vector<8x32xf32>
    %37 = arith.mulf %32, %36 : vector<8x32xf32>
    %38 = tpu.concatenate %37, %13 in 1 : vector<8x32xf32>, vector<8x32xf32> -> vector<8x64xf32>
    %39 = arith.truncf %38 : vector<8x64xf32> to vector<8x64xbf16>
    %cst_20 = arith.constant dense<0.000000e+00> : vector<8x128xf32>
    %40 = tpu.matmul %39, %8, %cst_20 {dimension_numbers = #tpu.dot_dimension_numbers<[1], [0], [0], [1], [0, 0, 1, 1], [], []>} : vector<8x64xbf16>, vector<64x128xbf16>, vector<8x128xf32> -> vector<8x128xf32>
    %41 = arith.addf %40, %11 : vector<8x128xf32>
    %42 = arith.negf %41 : vector<8x128xf32>
    %43 = math.exp %42 : vector<8x128xf32>
    %cst_21 = arith.constant 1.000000e+00 : f32
    %44 = vector.broadcast %cst_21 : f32 to vector<8x128xf32>
    %45 = arith.addf %44, %43 : vector<8x128xf32>
    %46 = arith.divf %44, %45 : vector<8x128xf32>
    %47 = vector.extract_strided_slice %41 {offsets = [0, 64], sizes = [8, 32], strides = [1, 1]} : vector<8x128xf32> to vector<8x32xf32>
    %48 = math.tanh %47 : vector<8x32xf32>
    %49 = vector.extract_strided_slice %46 {offsets = [0, 0], sizes = [8, 32], strides = [1, 1]} : vector<8x128xf32> to vector<8x32xf32>
    %50 = vector.extract_strided_slice %46 {offsets = [0, 32], sizes = [8, 32], strides = [1, 1]} : vector<8x128xf32> to vector<8x32xf32>
    %51 = vector.extract_strided_slice %46 {offsets = [0, 96], sizes = [8, 32], strides = [1, 1]} : vector<8x128xf32> to vector<8x32xf32>
    %52 = arith.mulf %50, %15 : vector<8x32xf32>
    %53 = arith.mulf %49, %48 : vector<8x32xf32>
    %54 = arith.addf %52, %53 : vector<8x32xf32>
    %55 = math.tanh %54 : vector<8x32xf32>
    %56 = arith.mulf %51, %55 : vector<8x32xf32>
    %c1_i32 = arith.constant 1 : i32
    %c8_i32_22 = arith.constant 8 : i32
    %57 = arith.muli %c1_i32, %c8_i32_22 : i32
    %58 = tpu.assume_multiple %57, 8 : i32
    %59 = arith.index_cast %58 : i32 to index
    %c0_23 = arith.constant 0 : index
    %60 = vector.load %arg12[%59, %c0_23] : memref<64x128xf32, #tpu.memory_space<vmem>>, vector<8x128xf32>
    %61 = arith.truncf %37 : vector<8x32xf32> to vector<8x32xbf16>
    %cst_24 = arith.constant dense<0.000000e+00> : vector<8x128xf32>
    %62 = tpu.matmul %61, %7, %cst_24 {dimension_numbers = #tpu.dot_dimension_numbers<[1], [0], [0], [1], [0, 0, 1, 1], [], []>} : vector<8x32xbf16>, vector<32x128xbf16>, vector<8x128xf32> -> vector<8x128xf32>
    %63 = arith.addf %60, %62 : vector<8x128xf32>
    %64 = arith.negf %63 : vector<8x128xf32>
    %65 = math.exp %64 : vector<8x128xf32>
    %cst_25 = arith.constant 1.000000e+00 : f32
    %66 = vector.broadcast %cst_25 : f32 to vector<8x128xf32>
    %67 = arith.addf %66, %65 : vector<8x128xf32>
    %68 = arith.divf %66, %67 : vector<8x128xf32>
    %69 = vector.extract_strided_slice %63 {offsets = [0, 64], sizes = [8, 32], strides = [1, 1]} : vector<8x128xf32> to vector<8x32xf32>
    %70 = math.tanh %69 : vector<8x32xf32>
    %71 = vector.extract_strided_slice %68 {offsets = [0, 0], sizes = [8, 32], strides = [1, 1]} : vector<8x128xf32> to vector<8x32xf32>
    %72 = vector.extract_strided_slice %68 {offsets = [0, 32], sizes = [8, 32], strides = [1, 1]} : vector<8x128xf32> to vector<8x32xf32>
    %73 = vector.extract_strided_slice %68 {offsets = [0, 96], sizes = [8, 32], strides = [1, 1]} : vector<8x128xf32> to vector<8x32xf32>
    %74 = arith.mulf %72, %35 : vector<8x32xf32>
    %75 = arith.mulf %71, %70 : vector<8x32xf32>
    %76 = arith.addf %74, %75 : vector<8x32xf32>
    %77 = math.tanh %76 : vector<8x32xf32>
    %78 = arith.mulf %73, %77 : vector<8x32xf32>
    %79 = tpu.concatenate %78, %56 in 1 : vector<8x32xf32>, vector<8x32xf32> -> vector<8x64xf32>
    %80 = arith.truncf %79 : vector<8x64xf32> to vector<8x64xbf16>
    %cst_26 = arith.constant dense<0.000000e+00> : vector<8x128xf32>
    %81 = tpu.matmul %80, %8, %cst_26 {dimension_numbers = #tpu.dot_dimension_numbers<[1], [0], [0], [1], [0, 0, 1, 1], [], []>} : vector<8x64xbf16>, vector<64x128xbf16>, vector<8x128xf32> -> vector<8x128xf32>
    %82 = arith.addf %81, %11 : vector<8x128xf32>
    %83 = arith.negf %82 : vector<8x128xf32>
    %84 = math.exp %83 : vector<8x128xf32>
    %cst_27 = arith.constant 1.000000e+00 : f32
    %85 = vector.broadcast %cst_27 : f32 to vector<8x128xf32>
    %86 = arith.addf %85, %84 : vector<8x128xf32>
    %87 = arith.divf %85, %86 : vector<8x128xf32>
    %88 = vector.extract_strided_slice %82 {offsets = [0, 64], sizes = [8, 32], strides = [1, 1]} : vector<8x128xf32> to vector<8x32xf32>
    %89 = math.tanh %88 : vector<8x32xf32>
    %90 = vector.extract_strided_slice %87 {offsets = [0, 0], sizes = [8, 32], strides = [1, 1]} : vector<8x128xf32> to vector<8x32xf32>
    %91 = vector.extract_strided_slice %87 {offsets = [0, 32], sizes = [8, 32], strides = [1, 1]} : vector<8x128xf32> to vector<8x32xf32>
    %92 = vector.extract_strided_slice %87 {offsets = [0, 96], sizes = [8, 32], strides = [1, 1]} : vector<8x128xf32> to vector<8x32xf32>
    %93 = arith.mulf %91, %54 : vector<8x32xf32>
    %94 = arith.mulf %90, %89 : vector<8x32xf32>
    %95 = arith.addf %93, %94 : vector<8x32xf32>
    %96 = math.tanh %95 : vector<8x32xf32>
    %97 = arith.mulf %92, %96 : vector<8x32xf32>
    %c2_i32 = arith.constant 2 : i32
    %c8_i32_28 = arith.constant 8 : i32
    %98 = arith.muli %c2_i32, %c8_i32_28 : i32
    %99 = tpu.assume_multiple %98, 8 : i32
    %100 = arith.index_cast %99 : i32 to index
    %c0_29 = arith.constant 0 : index
    %101 = vector.load %arg12[%100, %c0_29] : memref<64x128xf32, #tpu.memory_space<vmem>>, vector<8x128xf32>
    %102 = arith.truncf %78 : vector<8x32xf32> to vector<8x32xbf16>
    %cst_30 = arith.constant dense<0.000000e+00> : vector<8x128xf32>
    %103 = tpu.matmul %102, %7, %cst_30 {dimension_numbers = #tpu.dot_dimension_numbers<[1], [0], [0], [1], [0, 0, 1, 1], [], []>} : vector<8x32xbf16>, vector<32x128xbf16>, vector<8x128xf32> -> vector<8x128xf32>
    %104 = arith.addf %101, %103 : vector<8x128xf32>
    %105 = arith.negf %104 : vector<8x128xf32>
    %106 = math.exp %105 : vector<8x128xf32>
    %cst_31 = arith.constant 1.000000e+00 : f32
    %107 = vector.broadcast %cst_31 : f32 to vector<8x128xf32>
    %108 = arith.addf %107, %106 : vector<8x128xf32>
    %109 = arith.divf %107, %108 : vector<8x128xf32>
    %110 = vector.extract_strided_slice %104 {offsets = [0, 64], sizes = [8, 32], strides = [1, 1]} : vector<8x128xf32> to vector<8x32xf32>
    %111 = math.tanh %110 : vector<8x32xf32>
    %112 = vector.extract_strided_slice %109 {offsets = [0, 0], sizes = [8, 32], strides = [1, 1]} : vector<8x128xf32> to vector<8x32xf32>
    %113 = vector.extract_strided_slice %109 {offsets = [0, 32], sizes = [8, 32], strides = [1, 1]} : vector<8x128xf32> to vector<8x32xf32>
    %114 = vector.extract_strided_slice %109 {offsets = [0, 96], sizes = [8, 32], strides = [1, 1]} : vector<8x128xf32> to vector<8x32xf32>
    %115 = arith.mulf %113, %76 : vector<8x32xf32>
    %116 = arith.mulf %112, %111 : vector<8x32xf32>
    %117 = arith.addf %115, %116 : vector<8x32xf32>
    %118 = math.tanh %117 : vector<8x32xf32>
    %119 = arith.mulf %114, %118 : vector<8x32xf32>
    %120 = tpu.concatenate %119, %97 in 1 : vector<8x32xf32>, vector<8x32xf32> -> vector<8x64xf32>
    %121 = arith.truncf %120 : vector<8x64xf32> to vector<8x64xbf16>
    %cst_32 = arith.constant dense<0.000000e+00> : vector<8x128xf32>
    %122 = tpu.matmul %121, %8, %cst_32 {dimension_numbers = #tpu.dot_dimension_numbers<[1], [0], [0], [1], [0, 0, 1, 1], [], []>} : vector<8x64xbf16>, vector<64x128xbf16>, vector<8x128xf32> -> vector<8x128xf32>
    %123 = arith.addf %122, %11 : vector<8x128xf32>
    %124 = arith.negf %123 : vector<8x128xf32>
    %125 = math.exp %124 : vector<8x128xf32>
    %cst_33 = arith.constant 1.000000e+00 : f32
    %126 = vector.broadcast %cst_33 : f32 to vector<8x128xf32>
    %127 = arith.addf %126, %125 : vector<8x128xf32>
    %128 = arith.divf %126, %127 : vector<8x128xf32>
    %129 = vector.extract_strided_slice %123 {offsets = [0, 64], sizes = [8, 32], strides = [1, 1]} : vector<8x128xf32> to vector<8x32xf32>
    %130 = math.tanh %129 : vector<8x32xf32>
    %131 = vector.extract_strided_slice %128 {offsets = [0, 0], sizes = [8, 32], strides = [1, 1]} : vector<8x128xf32> to vector<8x32xf32>
    %132 = vector.extract_strided_slice %128 {offsets = [0, 32], sizes = [8, 32], strides = [1, 1]} : vector<8x128xf32> to vector<8x32xf32>
    %133 = vector.extract_strided_slice %128 {offsets = [0, 96], sizes = [8, 32], strides = [1, 1]} : vector<8x128xf32> to vector<8x32xf32>
    %134 = arith.mulf %132, %95 : vector<8x32xf32>
    %135 = arith.mulf %131, %130 : vector<8x32xf32>
    %136 = arith.addf %134, %135 : vector<8x32xf32>
    %137 = math.tanh %136 : vector<8x32xf32>
    %138 = arith.mulf %133, %137 : vector<8x32xf32>
    %c3_i32 = arith.constant 3 : i32
    %c8_i32_34 = arith.constant 8 : i32
    %139 = arith.muli %c3_i32, %c8_i32_34 : i32
    %140 = tpu.assume_multiple %139, 8 : i32
    %141 = arith.index_cast %140 : i32 to index
    %c0_35 = arith.constant 0 : index
    %142 = vector.load %arg12[%141, %c0_35] : memref<64x128xf32, #tpu.memory_space<vmem>>, vector<8x128xf32>
    %143 = arith.truncf %119 : vector<8x32xf32> to vector<8x32xbf16>
    %cst_36 = arith.constant dense<0.000000e+00> : vector<8x128xf32>
    %144 = tpu.matmul %143, %7, %cst_36 {dimension_numbers = #tpu.dot_dimension_numbers<[1], [0], [0], [1], [0, 0, 1, 1], [], []>} : vector<8x32xbf16>, vector<32x128xbf16>, vector<8x128xf32> -> vector<8x128xf32>
    %145 = arith.addf %142, %144 : vector<8x128xf32>
    %146 = arith.negf %145 : vector<8x128xf32>
    %147 = math.exp %146 : vector<8x128xf32>
    %cst_37 = arith.constant 1.000000e+00 : f32
    %148 = vector.broadcast %cst_37 : f32 to vector<8x128xf32>
    %149 = arith.addf %148, %147 : vector<8x128xf32>
    %150 = arith.divf %148, %149 : vector<8x128xf32>
    %151 = vector.extract_strided_slice %145 {offsets = [0, 64], sizes = [8, 32], strides = [1, 1]} : vector<8x128xf32> to vector<8x32xf32>
    %152 = math.tanh %151 : vector<8x32xf32>
    %153 = vector.extract_strided_slice %150 {offsets = [0, 0], sizes = [8, 32], strides = [1, 1]} : vector<8x128xf32> to vector<8x32xf32>
    %154 = vector.extract_strided_slice %150 {offsets = [0, 32], sizes = [8, 32], strides = [1, 1]} : vector<8x128xf32> to vector<8x32xf32>
    %155 = vector.extract_strided_slice %150 {offsets = [0, 96], sizes = [8, 32], strides = [1, 1]} : vector<8x128xf32> to vector<8x32xf32>
    %156 = arith.mulf %154, %117 : vector<8x32xf32>
    %157 = arith.mulf %153, %152 : vector<8x32xf32>
    %158 = arith.addf %156, %157 : vector<8x32xf32>
    %159 = math.tanh %158 : vector<8x32xf32>
    %160 = arith.mulf %155, %159 : vector<8x32xf32>
    %161 = tpu.concatenate %160, %138 in 1 : vector<8x32xf32>, vector<8x32xf32> -> vector<8x64xf32>
    %162 = arith.truncf %161 : vector<8x64xf32> to vector<8x64xbf16>
    %cst_38 = arith.constant dense<0.000000e+00> : vector<8x128xf32>
    %163 = tpu.matmul %162, %8, %cst_38 {dimension_numbers = #tpu.dot_dimension_numbers<[1], [0], [0], [1], [0, 0, 1, 1], [], []>} : vector<8x64xbf16>, vector<64x128xbf16>, vector<8x128xf32> -> vector<8x128xf32>
    %164 = arith.addf %163, %11 : vector<8x128xf32>
    %165 = arith.negf %164 : vector<8x128xf32>
    %166 = math.exp %165 : vector<8x128xf32>
    %cst_39 = arith.constant 1.000000e+00 : f32
    %167 = vector.broadcast %cst_39 : f32 to vector<8x128xf32>
    %168 = arith.addf %167, %166 : vector<8x128xf32>
    %169 = arith.divf %167, %168 : vector<8x128xf32>
    %170 = vector.extract_strided_slice %164 {offsets = [0, 64], sizes = [8, 32], strides = [1, 1]} : vector<8x128xf32> to vector<8x32xf32>
    %171 = math.tanh %170 : vector<8x32xf32>
    %172 = vector.extract_strided_slice %169 {offsets = [0, 0], sizes = [8, 32], strides = [1, 1]} : vector<8x128xf32> to vector<8x32xf32>
    %173 = vector.extract_strided_slice %169 {offsets = [0, 32], sizes = [8, 32], strides = [1, 1]} : vector<8x128xf32> to vector<8x32xf32>
    %174 = vector.extract_strided_slice %169 {offsets = [0, 96], sizes = [8, 32], strides = [1, 1]} : vector<8x128xf32> to vector<8x32xf32>
    %175 = arith.mulf %173, %136 : vector<8x32xf32>
    %176 = arith.mulf %172, %171 : vector<8x32xf32>
    %177 = arith.addf %175, %176 : vector<8x32xf32>
    %178 = math.tanh %177 : vector<8x32xf32>
    %179 = arith.mulf %174, %178 : vector<8x32xf32>
    %c4_i32 = arith.constant 4 : i32
    %c8_i32_40 = arith.constant 8 : i32
    %180 = arith.muli %c4_i32, %c8_i32_40 : i32
    %181 = tpu.assume_multiple %180, 8 : i32
    %182 = arith.index_cast %181 : i32 to index
    %c0_41 = arith.constant 0 : index
    %183 = vector.load %arg12[%182, %c0_41] : memref<64x128xf32, #tpu.memory_space<vmem>>, vector<8x128xf32>
    %184 = arith.truncf %160 : vector<8x32xf32> to vector<8x32xbf16>
    %cst_42 = arith.constant dense<0.000000e+00> : vector<8x128xf32>
    %185 = tpu.matmul %184, %7, %cst_42 {dimension_numbers = #tpu.dot_dimension_numbers<[1], [0], [0], [1], [0, 0, 1, 1], [], []>} : vector<8x32xbf16>, vector<32x128xbf16>, vector<8x128xf32> -> vector<8x128xf32>
    %186 = arith.addf %183, %185 : vector<8x128xf32>
    %187 = arith.negf %186 : vector<8x128xf32>
    %188 = math.exp %187 : vector<8x128xf32>
    %cst_43 = arith.constant 1.000000e+00 : f32
    %189 = vector.broadcast %cst_43 : f32 to vector<8x128xf32>
    %190 = arith.addf %189, %188 : vector<8x128xf32>
    %191 = arith.divf %189, %190 : vector<8x128xf32>
    %192 = vector.extract_strided_slice %186 {offsets = [0, 64], sizes = [8, 32], strides = [1, 1]} : vector<8x128xf32> to vector<8x32xf32>
    %193 = math.tanh %192 : vector<8x32xf32>
    %194 = vector.extract_strided_slice %191 {offsets = [0, 0], sizes = [8, 32], strides = [1, 1]} : vector<8x128xf32> to vector<8x32xf32>
    %195 = vector.extract_strided_slice %191 {offsets = [0, 32], sizes = [8, 32], strides = [1, 1]} : vector<8x128xf32> to vector<8x32xf32>
    %196 = vector.extract_strided_slice %191 {offsets = [0, 96], sizes = [8, 32], strides = [1, 1]} : vector<8x128xf32> to vector<8x32xf32>
    %197 = arith.mulf %195, %158 : vector<8x32xf32>
    %198 = arith.mulf %194, %193 : vector<8x32xf32>
    %199 = arith.addf %197, %198 : vector<8x32xf32>
    %200 = math.tanh %199 : vector<8x32xf32>
    %201 = arith.mulf %196, %200 : vector<8x32xf32>
    %202 = tpu.concatenate %201, %179 in 1 : vector<8x32xf32>, vector<8x32xf32> -> vector<8x64xf32>
    %203 = arith.truncf %202 : vector<8x64xf32> to vector<8x64xbf16>
    %cst_44 = arith.constant dense<0.000000e+00> : vector<8x128xf32>
    %204 = tpu.matmul %203, %8, %cst_44 {dimension_numbers = #tpu.dot_dimension_numbers<[1], [0], [0], [1], [0, 0, 1, 1], [], []>} : vector<8x64xbf16>, vector<64x128xbf16>, vector<8x128xf32> -> vector<8x128xf32>
    %205 = arith.addf %204, %11 : vector<8x128xf32>
    %206 = arith.negf %205 : vector<8x128xf32>
    %207 = math.exp %206 : vector<8x128xf32>
    %cst_45 = arith.constant 1.000000e+00 : f32
    %208 = vector.broadcast %cst_45 : f32 to vector<8x128xf32>
    %209 = arith.addf %208, %207 : vector<8x128xf32>
    %210 = arith.divf %208, %209 : vector<8x128xf32>
    %211 = vector.extract_strided_slice %205 {offsets = [0, 64], sizes = [8, 32], strides = [1, 1]} : vector<8x128xf32> to vector<8x32xf32>
    %212 = math.tanh %211 : vector<8x32xf32>
    %213 = vector.extract_strided_slice %210 {offsets = [0, 0], sizes = [8, 32], strides = [1, 1]} : vector<8x128xf32> to vector<8x32xf32>
    %214 = vector.extract_strided_slice %210 {offsets = [0, 32], sizes = [8, 32], strides = [1, 1]} : vector<8x128xf32> to vector<8x32xf32>
    %215 = vector.extract_strided_slice %210 {offsets = [0, 96], sizes = [8, 32], strides = [1, 1]} : vector<8x128xf32> to vector<8x32xf32>
    %216 = arith.mulf %214, %177 : vector<8x32xf32>
    %217 = arith.mulf %213, %212 : vector<8x32xf32>
    %218 = arith.addf %216, %217 : vector<8x32xf32>
    %219 = math.tanh %218 : vector<8x32xf32>
    %220 = arith.mulf %215, %219 : vector<8x32xf32>
    %c5_i32 = arith.constant 5 : i32
    %c8_i32_46 = arith.constant 8 : i32
    %221 = arith.muli %c5_i32, %c8_i32_46 : i32
    %222 = tpu.assume_multiple %221, 8 : i32
    %223 = arith.index_cast %222 : i32 to index
    %c0_47 = arith.constant 0 : index
    %224 = vector.load %arg12[%223, %c0_47] : memref<64x128xf32, #tpu.memory_space<vmem>>, vector<8x128xf32>
    %225 = arith.truncf %201 : vector<8x32xf32> to vector<8x32xbf16>
    %cst_48 = arith.constant dense<0.000000e+00> : vector<8x128xf32>
    %226 = tpu.matmul %225, %7, %cst_48 {dimension_numbers = #tpu.dot_dimension_numbers<[1], [0], [0], [1], [0, 0, 1, 1], [], []>} : vector<8x32xbf16>, vector<32x128xbf16>, vector<8x128xf32> -> vector<8x128xf32>
    %227 = arith.addf %224, %226 : vector<8x128xf32>
    %228 = arith.negf %227 : vector<8x128xf32>
    %229 = math.exp %228 : vector<8x128xf32>
    %cst_49 = arith.constant 1.000000e+00 : f32
    %230 = vector.broadcast %cst_49 : f32 to vector<8x128xf32>
    %231 = arith.addf %230, %229 : vector<8x128xf32>
    %232 = arith.divf %230, %231 : vector<8x128xf32>
    %233 = vector.extract_strided_slice %227 {offsets = [0, 64], sizes = [8, 32], strides = [1, 1]} : vector<8x128xf32> to vector<8x32xf32>
    %234 = math.tanh %233 : vector<8x32xf32>
    %235 = vector.extract_strided_slice %232 {offsets = [0, 0], sizes = [8, 32], strides = [1, 1]} : vector<8x128xf32> to vector<8x32xf32>
    %236 = vector.extract_strided_slice %232 {offsets = [0, 32], sizes = [8, 32], strides = [1, 1]} : vector<8x128xf32> to vector<8x32xf32>
    %237 = vector.extract_strided_slice %232 {offsets = [0, 96], sizes = [8, 32], strides = [1, 1]} : vector<8x128xf32> to vector<8x32xf32>
    %238 = arith.mulf %236, %199 : vector<8x32xf32>
    %239 = arith.mulf %235, %234 : vector<8x32xf32>
    %240 = arith.addf %238, %239 : vector<8x32xf32>
    %241 = math.tanh %240 : vector<8x32xf32>
    %242 = arith.mulf %237, %241 : vector<8x32xf32>
    %243 = tpu.concatenate %242, %220 in 1 : vector<8x32xf32>, vector<8x32xf32> -> vector<8x64xf32>
    %244 = arith.truncf %243 : vector<8x64xf32> to vector<8x64xbf16>
    %cst_50 = arith.constant dense<0.000000e+00> : vector<8x128xf32>
    %245 = tpu.matmul %244, %8, %cst_50 {dimension_numbers = #tpu.dot_dimension_numbers<[1], [0], [0], [1], [0, 0, 1, 1], [], []>} : vector<8x64xbf16>, vector<64x128xbf16>, vector<8x128xf32> -> vector<8x128xf32>
    %246 = arith.addf %245, %11 : vector<8x128xf32>
    %247 = arith.negf %246 : vector<8x128xf32>
    %248 = math.exp %247 : vector<8x128xf32>
    %cst_51 = arith.constant 1.000000e+00 : f32
    %249 = vector.broadcast %cst_51 : f32 to vector<8x128xf32>
    %250 = arith.addf %249, %248 : vector<8x128xf32>
    %251 = arith.divf %249, %250 : vector<8x128xf32>
    %252 = vector.extract_strided_slice %246 {offsets = [0, 64], sizes = [8, 32], strides = [1, 1]} : vector<8x128xf32> to vector<8x32xf32>
    %253 = math.tanh %252 : vector<8x32xf32>
    %254 = vector.extract_strided_slice %251 {offsets = [0, 0], sizes = [8, 32], strides = [1, 1]} : vector<8x128xf32> to vector<8x32xf32>
    %255 = vector.extract_strided_slice %251 {offsets = [0, 32], sizes = [8, 32], strides = [1, 1]} : vector<8x128xf32> to vector<8x32xf32>
    %256 = vector.extract_strided_slice %251 {offsets = [0, 96], sizes = [8, 32], strides = [1, 1]} : vector<8x128xf32> to vector<8x32xf32>
    %257 = arith.mulf %255, %218 : vector<8x32xf32>
    %258 = arith.mulf %254, %253 : vector<8x32xf32>
    %259 = arith.addf %257, %258 : vector<8x32xf32>
    %260 = math.tanh %259 : vector<8x32xf32>
    %261 = arith.mulf %256, %260 : vector<8x32xf32>
    %c6_i32 = arith.constant 6 : i32
    %c8_i32_52 = arith.constant 8 : i32
    %262 = arith.muli %c6_i32, %c8_i32_52 : i32
    %263 = tpu.assume_multiple %262, 8 : i32
    %264 = arith.index_cast %263 : i32 to index
    %c0_53 = arith.constant 0 : index
    %265 = vector.load %arg12[%264, %c0_53] : memref<64x128xf32, #tpu.memory_space<vmem>>, vector<8x128xf32>
    %266 = arith.truncf %242 : vector<8x32xf32> to vector<8x32xbf16>
    %cst_54 = arith.constant dense<0.000000e+00> : vector<8x128xf32>
    %267 = tpu.matmul %266, %7, %cst_54 {dimension_numbers = #tpu.dot_dimension_numbers<[1], [0], [0], [1], [0, 0, 1, 1], [], []>} : vector<8x32xbf16>, vector<32x128xbf16>, vector<8x128xf32> -> vector<8x128xf32>
    %268 = arith.addf %265, %267 : vector<8x128xf32>
    %269 = arith.negf %268 : vector<8x128xf32>
    %270 = math.exp %269 : vector<8x128xf32>
    %cst_55 = arith.constant 1.000000e+00 : f32
    %271 = vector.broadcast %cst_55 : f32 to vector<8x128xf32>
    %272 = arith.addf %271, %270 : vector<8x128xf32>
    %273 = arith.divf %271, %272 : vector<8x128xf32>
    %274 = vector.extract_strided_slice %268 {offsets = [0, 64], sizes = [8, 32], strides = [1, 1]} : vector<8x128xf32> to vector<8x32xf32>
    %275 = math.tanh %274 : vector<8x32xf32>
    %276 = vector.extract_strided_slice %273 {offsets = [0, 0], sizes = [8, 32], strides = [1, 1]} : vector<8x128xf32> to vector<8x32xf32>
    %277 = vector.extract_strided_slice %273 {offsets = [0, 32], sizes = [8, 32], strides = [1, 1]} : vector<8x128xf32> to vector<8x32xf32>
    %278 = vector.extract_strided_slice %273 {offsets = [0, 96], sizes = [8, 32], strides = [1, 1]} : vector<8x128xf32> to vector<8x32xf32>
    %279 = arith.mulf %277, %240 : vector<8x32xf32>
    %280 = arith.mulf %276, %275 : vector<8x32xf32>
    %281 = arith.addf %279, %280 : vector<8x32xf32>
    %282 = math.tanh %281 : vector<8x32xf32>
    %283 = arith.mulf %278, %282 : vector<8x32xf32>
    %284 = tpu.concatenate %283, %261 in 1 : vector<8x32xf32>, vector<8x32xf32> -> vector<8x64xf32>
    %285 = arith.truncf %284 : vector<8x64xf32> to vector<8x64xbf16>
    %cst_56 = arith.constant dense<0.000000e+00> : vector<8x128xf32>
    %286 = tpu.matmul %285, %8, %cst_56 {dimension_numbers = #tpu.dot_dimension_numbers<[1], [0], [0], [1], [0, 0, 1, 1], [], []>} : vector<8x64xbf16>, vector<64x128xbf16>, vector<8x128xf32> -> vector<8x128xf32>
    %287 = arith.addf %286, %11 : vector<8x128xf32>
    %288 = arith.negf %287 : vector<8x128xf32>
    %289 = math.exp %288 : vector<8x128xf32>
    %cst_57 = arith.constant 1.000000e+00 : f32
    %290 = vector.broadcast %cst_57 : f32 to vector<8x128xf32>
    %291 = arith.addf %290, %289 : vector<8x128xf32>
    %292 = arith.divf %290, %291 : vector<8x128xf32>
    %293 = vector.extract_strided_slice %287 {offsets = [0, 64], sizes = [8, 32], strides = [1, 1]} : vector<8x128xf32> to vector<8x32xf32>
    %294 = math.tanh %293 : vector<8x32xf32>
    %295 = vector.extract_strided_slice %292 {offsets = [0, 0], sizes = [8, 32], strides = [1, 1]} : vector<8x128xf32> to vector<8x32xf32>
    %296 = vector.extract_strided_slice %292 {offsets = [0, 32], sizes = [8, 32], strides = [1, 1]} : vector<8x128xf32> to vector<8x32xf32>
    %297 = vector.extract_strided_slice %292 {offsets = [0, 96], sizes = [8, 32], strides = [1, 1]} : vector<8x128xf32> to vector<8x32xf32>
    %298 = arith.mulf %296, %259 : vector<8x32xf32>
    %299 = arith.mulf %295, %294 : vector<8x32xf32>
    %300 = arith.addf %298, %299 : vector<8x32xf32>
    %301 = math.tanh %300 : vector<8x32xf32>
    %302 = arith.mulf %297, %301 : vector<8x32xf32>
    %c7_i32 = arith.constant 7 : i32
    %c8_i32_58 = arith.constant 8 : i32
    %303 = arith.muli %c7_i32, %c8_i32_58 : i32
    %304 = tpu.assume_multiple %303, 8 : i32
    %305 = arith.index_cast %304 : i32 to index
    %c0_59 = arith.constant 0 : index
    %306 = vector.load %arg12[%305, %c0_59] : memref<64x128xf32, #tpu.memory_space<vmem>>, vector<8x128xf32>
    %307 = arith.truncf %283 : vector<8x32xf32> to vector<8x32xbf16>
    %cst_60 = arith.constant dense<0.000000e+00> : vector<8x128xf32>
    %308 = tpu.matmul %307, %7, %cst_60 {dimension_numbers = #tpu.dot_dimension_numbers<[1], [0], [0], [1], [0, 0, 1, 1], [], []>} : vector<8x32xbf16>, vector<32x128xbf16>, vector<8x128xf32> -> vector<8x128xf32>
    %309 = arith.addf %306, %308 : vector<8x128xf32>
    %310 = arith.negf %309 : vector<8x128xf32>
    %311 = math.exp %310 : vector<8x128xf32>
    %cst_61 = arith.constant 1.000000e+00 : f32
    %312 = vector.broadcast %cst_61 : f32 to vector<8x128xf32>
    %313 = arith.addf %312, %311 : vector<8x128xf32>
    %314 = arith.divf %312, %313 : vector<8x128xf32>
    %315 = vector.extract_strided_slice %309 {offsets = [0, 64], sizes = [8, 32], strides = [1, 1]} : vector<8x128xf32> to vector<8x32xf32>
    %316 = math.tanh %315 : vector<8x32xf32>
    %317 = vector.extract_strided_slice %314 {offsets = [0, 0], sizes = [8, 32], strides = [1, 1]} : vector<8x128xf32> to vector<8x32xf32>
    %318 = vector.extract_strided_slice %314 {offsets = [0, 32], sizes = [8, 32], strides = [1, 1]} : vector<8x128xf32> to vector<8x32xf32>
    %319 = vector.extract_strided_slice %314 {offsets = [0, 96], sizes = [8, 32], strides = [1, 1]} : vector<8x128xf32> to vector<8x32xf32>
    %320 = arith.mulf %318, %281 : vector<8x32xf32>
    %321 = arith.mulf %317, %316 : vector<8x32xf32>
    %322 = arith.addf %320, %321 : vector<8x32xf32>
    %323 = math.tanh %322 : vector<8x32xf32>
    %324 = arith.mulf %319, %323 : vector<8x32xf32>
    %325 = tpu.concatenate %324, %302 in 1 : vector<8x32xf32>, vector<8x32xf32> -> vector<8x64xf32>
    %326 = arith.truncf %325 : vector<8x64xf32> to vector<8x64xbf16>
    %cst_62 = arith.constant dense<0.000000e+00> : vector<8x128xf32>
    %327 = tpu.matmul %326, %8, %cst_62 {dimension_numbers = #tpu.dot_dimension_numbers<[1], [0], [0], [1], [0, 0, 1, 1], [], []>} : vector<8x64xbf16>, vector<64x128xbf16>, vector<8x128xf32> -> vector<8x128xf32>
    %328 = arith.addf %327, %11 : vector<8x128xf32>
    %329 = arith.negf %328 : vector<8x128xf32>
    %330 = math.exp %329 : vector<8x128xf32>
    %cst_63 = arith.constant 1.000000e+00 : f32
    %331 = vector.broadcast %cst_63 : f32 to vector<8x128xf32>
    %332 = arith.addf %331, %330 : vector<8x128xf32>
    %333 = arith.divf %331, %332 : vector<8x128xf32>
    %334 = vector.extract_strided_slice %328 {offsets = [0, 64], sizes = [8, 32], strides = [1, 1]} : vector<8x128xf32> to vector<8x32xf32>
    %335 = math.tanh %334 : vector<8x32xf32>
    %336 = vector.extract_strided_slice %333 {offsets = [0, 0], sizes = [8, 32], strides = [1, 1]} : vector<8x128xf32> to vector<8x32xf32>
    %337 = vector.extract_strided_slice %333 {offsets = [0, 32], sizes = [8, 32], strides = [1, 1]} : vector<8x128xf32> to vector<8x32xf32>
    %338 = vector.extract_strided_slice %333 {offsets = [0, 96], sizes = [8, 32], strides = [1, 1]} : vector<8x128xf32> to vector<8x32xf32>
    %339 = arith.mulf %337, %300 : vector<8x32xf32>
    %340 = arith.mulf %336, %335 : vector<8x32xf32>
    %341 = arith.addf %339, %340 : vector<8x32xf32>
    %342 = math.tanh %341 : vector<8x32xf32>
    %343 = arith.mulf %338, %342 : vector<8x32xf32>
    %c8_i32_64 = arith.constant 8 : i32
    %c0_65 = arith.constant 0 : index
    %c0_66 = arith.constant 0 : index
    %344 = vector.load %arg7[%c0_65, %c0_66] : memref<32x128xf32, #tpu.memory_space<vmem>>, vector<32x128xf32>
    %cst_67 = arith.constant dense<0.000000e+00> : vector<8x128xf32>
    %345 = tpu.matmul %343, %344, %cst_67 {dimension_numbers = #tpu.dot_dimension_numbers<[1], [0], [0], [1], [0, 0, 1, 1], [], []>} : vector<8x32xf32>, vector<32x128xf32>, vector<8x128xf32> -> vector<8x128xf32>
    %c0_68 = arith.constant 0 : index
    %c0_69 = arith.constant 0 : index
    %346 = vector.load %arg8[%c0_68, %c0_69] : memref<1x128xf32, #tpu.memory_space<vmem>>, vector<1x128xf32>
    %347 = vector.broadcast %346 : vector<1x128xf32> to vector<8x128xf32>
    %348 = arith.addf %345, %347 : vector<8x128xf32>
    %cst_70 = arith.constant 0.000000e+00 : f32
    %349 = vector.broadcast %cst_70 : f32 to vector<8x128xf32>
    %350 = arith.maximumf %348, %349 : vector<8x128xf32>
    %c0_71 = arith.constant 0 : index
    %c0_72 = arith.constant 0 : index
    %351 = vector.load %arg9[%c0_71, %c0_72] : memref<128x128xf32, #tpu.memory_space<vmem>>, vector<128x128xf32>
    %cst_73 = arith.constant dense<0.000000e+00> : vector<8x128xf32>
    %352 = tpu.matmul %350, %351, %cst_73 {dimension_numbers = #tpu.dot_dimension_numbers<[1], [0], [0], [1], [0, 0, 1, 1], [], []>} : vector<8x128xf32>, vector<128x128xf32>, vector<8x128xf32> -> vector<8x128xf32>
    %c0_74 = arith.constant 0 : index
    %c0_75 = arith.constant 0 : index
    %353 = vector.load %arg10[%c0_74, %c0_75] : memref<1x128xf32, #tpu.memory_space<vmem>>, vector<1x128xf32>
    %354 = vector.broadcast %353 : vector<1x128xf32> to vector<8x128xf32>
    %355 = arith.addf %352, %354 : vector<8x128xf32>
    %c0_76 = arith.constant 0 : index
    %c0_77 = arith.constant 0 : index
    %356 = vector.load %arg11[%c0_76, %c0_77] : memref<8x128xf32, #tpu.memory_space<vmem>>, vector<8x128xf32>
    tpu.vector_store %arg11[%c0_76, %c0_77], %355 {strides = array<i32>} : memref<8x128xf32, #tpu.memory_space<vmem>>, vector<8x128xf32>,
    return
  }
  func.func @transform_0(%arg0: i32) -> (i32, i32) {
    %c0_i32 = arith.constant 0 : i32
    %c0_i32_0 = arith.constant 0 : i32
    %c0_i32_1 = arith.constant 0 : i32
    return %c0_i32, %c0_i32_0 : i32, i32
  }
  func.func @transform_1(%arg0: i32) -> (i32, i32) {
    %c0_i32 = arith.constant 0 : i32
    %c0_i32_0 = arith.constant 0 : i32
    %c0_i32_1 = arith.constant 0 : i32
    return %c0_i32, %c0_i32_0 : i32, i32
  }
  func.func @transform_2(%arg0: i32) -> (i32, i32) {
    %c0_i32 = arith.constant 0 : i32
    %c0_i32_0 = arith.constant 0 : i32
    %c0_i32_1 = arith.constant 0 : i32
    return %c0_i32, %c0_i32_0 : i32, i32
  }
  func.func @transform_3(%arg0: i32) -> (i32, i32) {
    %c0_i32 = arith.constant 0 : i32
    %c0_i32_0 = arith.constant 0 : i32
    %c0_i32_1 = arith.constant 0 : i32
    return %c0_i32, %c0_i32_0 : i32, i32
  }
  func.func @transform_4(%arg0: i32) -> (i32, i32) {
    %c0_i32 = arith.constant 0 : i32
    %c0_i32_0 = arith.constant 0 : i32
    %c0_i32_1 = arith.constant 0 : i32
    return %c0_i32, %c0_i32_0 : i32, i32
  }
  func.func @transform_5(%arg0: i32) -> (i32, i32) {
    %c0_i32 = arith.constant 0 : i32
    %c0_i32_0 = arith.constant 0 : i32
    %c0_i32_1 = arith.constant 0 : i32
    return %c0_i32, %c0_i32_0 : i32, i32
  }
  func.func @transform_6(%arg0: i32) -> (i32, i32) {
    %c0_i32 = arith.constant 0 : i32
    %c0_i32_0 = arith.constant 0 : i32
    %c0_i32_1 = arith.constant 0 : i32
    return %c0_i32, %c0_i32_0 : i32, i32
  }
  func.func @transform_7(%arg0: i32) -> (i32, i32) {
    %c0_i32 = arith.constant 0 : i32
    %c0_i32_0 = arith.constant 0 : i32
    %c0_i32_1 = arith.constant 0 : i32
    return %c0_i32, %c0_i32_0 : i32, i32
  }
  func.func @transform_8(%arg0: i32) -> (i32, i32) {
    %c0_i32 = arith.constant 0 : i32
    %c0_i32_0 = arith.constant 0 : i32
    %c0_i32_1 = arith.constant 0 : i32
    return %c0_i32, %c0_i32_0 : i32, i32
  }
  func.func @transform_9(%arg0: i32) -> (i32, i32) {
    %c0_i32 = arith.constant 0 : i32
    %c0_i32_0 = arith.constant 0 : i32
    %c0_i32_1 = arith.constant 0 : i32
    return %c0_i32, %c0_i32_0 : i32, i32
  }
  func.func @transform_10(%arg0: i32) -> (i32, i32) {
    %c0_i32 = arith.constant 0 : i32
    %c0_i32_0 = arith.constant 0 : i32
    %c0_i32_1 = arith.constant 0 : i32
    return %c0_i32, %c0_i32_0 : i32, i32
  }
}

</mosaic_0001>

<llo_original>
// kernel: robust_model_forward.1
$region0: #{robust_model_forward.1}
  #allocation0 [shape = 'u32[]', space=smem, size = 0x4, offset = 0x4, fixed_abs, tag = 'smem constant byte address 0x4 - core index']
  #allocation1 [shape = 'u32[144,128]{1,0:T(1,128)}', space=vmem, size = 0x12000, scoped, tag = 'internal scratch']
  #allocation2 [shape = 'f32[64,128]{1,0:T(8,128)}', space=vmem, size = 0x8000, scoped, tag = 'scratch operand']
  %s0 = inlined_call_operand.vmem [shape: f32[64,5], index: 0, kind: input, shape index: {}]
  %s1 = inlined_call_operand.vmem [shape: f32[5,128], index: 1, kind: input, shape index: {}]
  %s2 = inlined_call_operand.vmem [shape: f32[1,128], index: 2, kind: input, shape index: {}]
  %s3 = inlined_call_operand.vmem [shape: bf16[32,128], index: 3, kind: input, shape index: {}]
  %s4 = inlined_call_operand.vmem [shape: bf16[64,128], index: 4, kind: input, shape index: {}]
  %s5 = inlined_call_operand.vmem [shape: f32[1,128], index: 5, kind: input, shape index: {}]
  %s6 = inlined_call_operand.vmem [shape: f32[32,128], index: 6, kind: input, shape index: {}]
  %s7 = inlined_call_operand.vmem [shape: f32[1,128], index: 7, kind: input, shape index: {}]
  %s8 = inlined_call_operand.vmem [shape: f32[128,128], index: 8, kind: input, shape index: {}]
  %s9 = inlined_call_operand.vmem [shape: f32[1,128], index: 9, kind: input, shape index: {}]
  %s10 = inlined_call_operand.vmem [shape: f32[8,128], index: 10, kind: output, shape index: {}]
  %s11 = sld [smem:[#allocation0]]
  $region50: #{robust_model_forward.1} parent=0
    _
  %s13 = ssub.s32 1, %s11
  %s14 = scalar_select 0, %s13, %s11
  // Predicated region
  $region2: #{robust_model_forward.1} parent=0 // pred_check
    _
  $region3: #{robust_model_forward.1} parent=0 // pred_check_branch
    %16 = sbr.rel (0) target = $region5
  $region4: #{robust_model_forward.1} parent=0 // pred_region
    _
  $region5: #{robust_model_forward.1} parent=0 // pred_fallthru
    _
  // Predicated region
  $region6: #{robust_model_forward.1} parent=0 // pred_check
    _
  $region7: #{robust_model_forward.1} parent=0 // pred_check_branch
    %18 = sbr.rel (0) target = $region9
  $region8: #{robust_model_forward.1} parent=0 // pred_region
    _
  $region9: #{robust_model_forward.1} parent=0 // pred_fallthru
    _
  // Predicated region
  $region10: #{robust_model_forward.1} parent=0 // pred_check
    _
  $region11: #{robust_model_forward.1} parent=0 // pred_check_branch
    %20 = sbr.rel (0) target = $region13
  $region12: #{robust_model_forward.1} parent=0 // pred_region
    _
  $region13: #{robust_model_forward.1} parent=0 // pred_fallthru
    _
  // Predicated region
  $region14: #{robust_model_forward.1} parent=0 // pred_check
    _
  $region15: #{robust_model_forward.1} parent=0 // pred_check_branch
    %22 = sbr.rel (0) target = $region17
  $region16: #{robust_model_forward.1} parent=0 // pred_region
    _
  $region17: #{robust_model_forward.1} parent=0 // pred_fallthru
    _
  // Predicated region
  $region18: #{robust_model_forward.1} parent=0 // pred_check
    _
  $region19: #{robust_model_forward.1} parent=0 // pred_check_branch
    %24 = sbr.rel (0) target = $region21
  $region20: #{robust_model_forward.1} parent=0 // pred_region
    _
  $region21: #{robust_model_forward.1} parent=0 // pred_fallthru
    _
  // Predicated region
  $region22: #{robust_model_forward.1} parent=0 // pred_check
    _
  $region23: #{robust_model_forward.1} parent=0 // pred_check_branch
    %26 = sbr.rel (0) target = $region25
  $region24: #{robust_model_forward.1} parent=0 // pred_region
    _
  $region25: #{robust_model_forward.1} parent=0 // pred_fallthru
    _
  // Predicated region
  $region26: #{robust_model_forward.1} parent=0 // pred_check
    _
  $region27: #{robust_model_forward.1} parent=0 // pred_check_branch
    %28 = sbr.rel (0) target = $region29
  $region28: #{robust_model_forward.1} parent=0 // pred_region
    _
  $region29: #{robust_model_forward.1} parent=0 // pred_fallthru
    _
  // Predicated region
  $region30: #{robust_model_forward.1} parent=0 // pred_check
    _
  $region31: #{robust_model_forward.1} parent=0 // pred_check_branch
    %30 = sbr.rel (0) target = $region33
  $region32: #{robust_model_forward.1} parent=0 // pred_region
    _
  $region33: #{robust_model_forward.1} parent=0 // pred_fallthru
    _
  // Predicated region
  $region34: #{robust_model_forward.1} parent=0 // pred_check
    _
  $region35: #{robust_model_forward.1} parent=0 // pred_check_branch
    %32 = sbr.rel (0) target = $region37
  $region36: #{robust_model_forward.1} parent=0 // pred_region
    _
  $region37: #{robust_model_forward.1} parent=0 // pred_fallthru
    _
  // Predicated region
  $region38: #{robust_model_forward.1} parent=0 // pred_check
    _
  $region39: #{robust_model_forward.1} parent=0 // pred_check_branch
    %34 = sbr.rel (0) target = $region41
  $region40: #{robust_model_forward.1} parent=0 // pred_region
    _
  $region41: #{robust_model_forward.1} parent=0 // pred_fallthru
    _
  %v36 = vld [vmem:[%s0] sm:$0xff]
  %v37 = vld [vmem:[%s0 + $0x8] sm:$0xff]
  %v38 = vld [vmem:[%s0 + $0x10] sm:$0xff]
  %v39 = vld [vmem:[%s0 + $0x18] sm:$0xff]
  %v40 = vld [vmem:[%s0 + $0x20] sm:$0xff]
  %v41 = vld [vmem:[%s0 + $0x28] sm:$0xff]
  %v42 = vld [vmem:[%s0 + $0x30] sm:$0xff]
  %v43 = vld [vmem:[%s0 + $0x38] sm:$0xff]
  %v44 = vld [vmem:[%s1] sm:$0x1f]
  %v45 = vld [vmem:[%s2] sm:$0x1]
  %v47 = vlaneseq
  %v48 = vshrl.u32 %v47, 7
  %v49 = vsub.s32 0, %v48
  %v50 = vrot.slane %v45, %v49
  %vm52 = vcmask 39936
  %v54 = vsel %vm52, %v36, 0
  %v57 = vsel %vm52, %v37, 0
  %v60 = vsel %vm52, %v38, 0
  %v63 = vsel %vm52, %v39, 0
  %v66 = vsel %vm52, %v40, 0
  %v69 = vsel %vm52, %v41, 0
  %v72 = vsel %vm52, %v42, 0
  %v75 = vsel %vm52, %v43, 0
  %vm77 = vcmask 1044480
  %v79 = vsel %vm77, %v44, 0
  %81 = vmatprep.subr.mxu0 0.0
  %82 = vmatpush1.msra.mxu0 0.0
  %83 = vmatprep.subr.mxu0 0.0
  %84 = vmatpush1.msra.mxu0 0.0
  %85 = vmatprep.subr.mxu0 0.0
  %86 = vmatpush1.msra.mxu0 0.0
  %87 = vmatprep.subr.mxu0 0.0
  %88 = vmatpush1.msra.mxu0 0.0
  %89 = vmatprep.subr.mxu0 0.0
  %90 = vmatpush1.msra.mxu0 0.0
  %91 = vmatprep.subr.mxu0 0.0
  %92 = vmatpush1.msra.mxu0 0.0
  %93 = vmatprep.subr.mxu0 0.0
  %94 = vmatpush1.msra.mxu0 0.0
  %95 = vmatprep.subr.mxu0 0.0
  %96 = vmatpush1.msra.mxu0 0.0
  %97 = vmatprep.subr.mxu0 0.0
  %98 = vmatpush1.msra.mxu0 0.0
  %99 = vmatprep.subr.mxu0 0.0
  %100 = vmatpush1.msra.mxu0 0.0
  %101 = vmatprep.subr.mxu0 0.0
  %102 = vmatpush1.msra.mxu0 0.0
  %103 = vmatprep.subr.mxu0 0.0
  %104 = vmatpush1.msra.mxu0 0.0
  %105 = vmatprep.subr.mxu0 0.0
  %106 = vmatpush1.msra.mxu0 0.0
  %107 = vmatprep.subr.mxu0 0.0
  %108 = vmatpush1.msra.mxu0 0.0
  %109 = vmatprep.subr.mxu0 0.0
  %110 = vmatpush1.msra.mxu0 0.0
  %111 = vmatprep.subr.mxu0 0.0
  %112 = vmatpush1.msra.mxu0 %v79
  %113 = vmatprep.subr.mxu0 0.0
  %114 = vmatpush2.msra.mxu0 0.0
  %115 = vmatprep.subr.mxu0 0.0
  %116 = vmatpush2.msra.mxu0 0.0
  %117 = vmatprep.subr.mxu0 0.0
  %118 = vmatpush2.msra.mxu0 0.0
  %119 = vmatprep.subr.mxu0 0.0
  %120 = vmatpush2.msra.mxu0 0.0
  %121 = vmatprep.subr.mxu0 0.0
  %122 = vmatpush2.msra.mxu0 0.0
  %123 = vmatprep.subr.mxu0 0.0
  %124 = vmatpush2.msra.mxu0 0.0
  %125 = vmatprep.subr.mxu0 0.0
  %126 = vmatpush2.msra.mxu0 0.0
  %127 = vmatprep.subr.mxu0 0.0
  %128 = vmatpush2.msra.mxu0 0.0
  %129 = vmatprep.subr.mxu0 0.0
  %130 = vmatpush2.msra.mxu0 0.0
  %131 = vmatprep.subr.mxu0 0.0
  %132 = vmatpush2.msra.mxu0 0.0
  %133 = vmatprep.subr.mxu0 0.0
  %134 = vmatpush2.msra.mxu0 0.0
  %135 = vmatprep.subr.mxu0 0.0
  %136 = vmatpush2.msra.mxu0 0.0
  %137 = vmatprep.subr.mxu0 0.0
  %138 = vmatpush2.msra.mxu0 0.0
  %139 = vmatprep.subr.mxu0 0.0
  %140 = vmatpush2.msra.mxu0 0.0
  %141 = vmatprep.subr.mxu0 0.0
  %142 = vmatpush2.msra.mxu0 0.0
  %143 = vmatprep.subr.mxu0 0.0
  %144 = vmatpush2.msra.mxu0 0.0
  %145 = vmatprep.mubr.f32.mxu0 0.0
  %146 = vmatmul.mubr.f32.gmra.mxu0 %v54
  %v147 = vpop.f32.mrf.mxu0
  %v148 = vadd.f32 %v50, %v147
  %v149 = vpop.f32.mrf.mxu0
  %150 = vmatprep.mubr.f32.mxu0 0.0
  %151 = vmatmul.mubr.f32.gmra.mxu0 %v57
  %v152 = vpop.f32.mrf.mxu0
  %v153 = vadd.f32 %v50, %v152
  %v154 = vpop.f32.mrf.mxu0
  %155 = vmatprep.mubr.f32.mxu0 0.0
  %156 = vmatmul.mubr.f32.gmra.mxu0 %v60
  %v157 = vpop.f32.mrf.mxu0
  %v158 = vadd.f32 %v50, %v157
  %v159 = vpop.f32.mrf.mxu0
  %160 = vmatprep.mubr.f32.mxu0 0.0
  %161 = vmatmul.mubr.f32.gmra.mxu0 %v63
  %v162 = vpop.f32.mrf.mxu0
  %v163 = vadd.f32 %v50, %v162
  %v164 = vpop.f32.mrf.mxu0
  %165 = vmatprep.mubr.f32.mxu0 0.0
  %166 = vmatmul.mubr.f32.gmra.mxu0 %v66
  %v167 = vpop.f32.mrf.mxu0
  %v168 = vadd.f32 %v50, %v167
  %v169 = vpop.f32.mrf.mxu0
  %170 = vmatprep.mubr.f32.mxu0 0.0
  %171 = vmatmul.mubr.f32.gmra.mxu0 %v69
  %v172 = vpop.f32.mrf.mxu0
  %v173 = vadd.f32 %v50, %v172
  %v174 = vpop.f32.mrf.mxu0
  %175 = vmatprep.mubr.f32.mxu0 0.0
  %176 = vmatmul.mubr.f32.gmra.mxu0 %v72
  %v177 = vpop.f32.mrf.mxu0
  %v178 = vadd.f32 %v50, %v177
  %v179 = vpop.f32.mrf.mxu0
  %180 = vmatprep.mubr.f32.mxu0 0.0
  %181 = vmatmul.mubr.f32.gmra.mxu0 %v75
  %v182 = vpop.f32.mrf.mxu0
  %v183 = vadd.f32 %v50, %v182
  %v184 = vpop.f32.mrf.mxu0
  %185 = vdwg.mxu0
  %186 = vst [vmem:[#allocation2] sm:$0xff] %v148
  %187 = vst [vmem:[#allocation2 + $0x8] sm:$0xff] %v153
  %188 = vst [vmem:[#allocation2 + $0x10] sm:$0xff] %v158
  %189 = vst [vmem:[#allocation2 + $0x18] sm:$0xff] %v163
  %190 = vst [vmem:[#allocation2 + $0x20] sm:$0xff] %v168
  %191 = vst [vmem:[#allocation2 + $0x28] sm:$0xff] %v173
  %192 = vst [vmem:[#allocation2 + $0x30] sm:$0xff] %v178
  %193 = vst [vmem:[#allocation2 + $0x38] sm:$0xff] %v183
  %v194 = vld [vmem:[%s3] sm:$0xf]
  %v195 = vld [vmem:[%s3 + $0x4] sm:$0xf]
  %v196 = vld [vmem:[%s3 + $0x8] sm:$0xf]
  %v197 = vld [vmem:[%s3 + $0xc] sm:$0xf]
  %v198 = vld [vmem:[%s4] sm:$0xf]
  %v199 = vld [vmem:[%s4 + $0x4] sm:$0xf]
  %v200 = vld [vmem:[%s4 + $0x8] sm:$0xf]
  %v201 = vld [vmem:[%s4 + $0xc] sm:$0xf]
  %v202 = vld [vmem:[%s4 + $0x10] sm:$0xf]
  %v203 = vld [vmem:[%s4 + $0x14] sm:$0xf]
  %v204 = vld [vmem:[%s4 + $0x18] sm:$0xf]
  %v205 = vld [vmem:[%s4 + $0x1c] sm:$0xf]
  %v206 = vld [vmem:[%s5] sm:$0x1]
  %v208 = vlaneseq
  %v209 = vshrl.u32 %v208, 7
  %v210 = vsub.s32 0, %v209
  %v211 = vrot.slane %v206, %v210
  %v213 = vld [vmem:[#allocation2] sm:$0xff]
  %v218 = vunpack.c.l.b16 %v194
  %v219 = vunpack.c.l.b16 %v195
  %v220 = vunpack.c.l.b16 %v196
  %v221 = vunpack.c.l.b16 %v197
  %v222 = vpack.c.b16 %v219, %v218
  %v223 = vpack.c.b16 %v221, %v220
  %vm226 = vcmask 261120
  %v228 = vsel %vm226, 0, 0
  %230 = vmatprep.subr.bf16.mxu0 0
  %231 = vmatpush1.bf16.msra.mxu0 0
  %232 = vmatprep.subr.bf16.mxu0 0
  %233 = vmatpush1.bf16.msra.mxu0 0
  %234 = vmatprep.subr.bf16.mxu0 0
  %235 = vmatpush1.bf16.msra.mxu0 0
  %236 = vmatprep.subr.bf16.mxu0 0
  %237 = vmatpush1.bf16.msra.mxu0 0
  %238 = vmatprep.subr.bf16.mxu0 0
  %239 = vmatpush1.bf16.msra.mxu0 0
  %240 = vmatprep.subr.bf16.mxu0 0
  %241 = vmatpush1.bf16.msra.mxu0 0
  %242 = vmatprep.subr.bf16.mxu0 0
  %243 = vmatpush1.bf16.msra.mxu0 %v223
  %244 = vmatprep.subr.bf16.mxu0 0
  %245 = vmatpush1.bf16.msra.mxu0 %v222
  %246 = vmatprep.subr.bf16.mxu0 0
  %247 = vmatpush2.bf16.msra.mxu0 0
  %248 = vmatprep.subr.bf16.mxu0 0
  %249 = vmatpush2.bf16.msra.mxu0 0
  %250 = vmatprep.subr.bf16.mxu0 0
  %251 = vmatpush2.bf16.msra.mxu0 0
  %252 = vmatprep.subr.bf16.mxu0 0
  %253 = vmatpush2.bf16.msra.mxu0 0
  %254 = vmatprep.subr.bf16.mxu0 0
  %255 = vmatpush2.bf16.msra.mxu0 0
  %256 = vmatprep.subr.bf16.mxu0 0
  %257 = vmatpush2.bf16.msra.mxu0 0
  %258 = vmatprep.subr.bf16.mxu0 0
  %259 = vmatpush2.bf16.msra.mxu0 0
  %260 = vmatprep.subr.bf16.mxu0 0
  %261 = vmatpush2.bf16.msra.mxu0 0
  %262 = vmatprep.mubr.bf16.mxu0 0
  %263 = vmatmul.mubr.bf16.gmra.mxu0 %v228
  %v264 = vpop.f32.mrf.mxu0
  %v265 = vadd.f32 0.0, %v264
  %v266 = vpop.f32.mrf.mxu0
  %v267 = vpop.f32.mrf.mxu0
  %v268 = vpop.f32.mrf.mxu0
  %269 = vdwg.mxu0
  %v270 = vadd.f32 %v213, %v265
  %v271 = vxor.u32 %v270, 2147483648
  %v272 = vmul.f32 %v271, 1.442695
  %v273 = vpow.pop %v272
  %v274 = vadd.f32 %v273, 1.0
  %v275 = vrcp.pop %v274
  %v276 = vmul.f32 1.0, %v275
  %v277 = vtanh.pop %v270
  %v278 = vmul.f32 %v276, 0.0
  %280 = vrot.lane.b32.xlu0 %v277, 64
  %v281 = vpop.permute.xlu0 %280
  %v283 = vmul.f32 %v276, %v281
  %285 = vrot.lane.b32.xlu0 %v283, 32
  %v286 = vpop.permute.xlu0 %285
  %v288 = vadd.f32 %v278, %v286
  %v289 = vtanh.pop %v288
  %291 = vrot.lane.b32.xlu0 %v289, 64
  %v292 = vpop.permute.xlu0 %291
  %v294 = vmul.f32 %v276, %v292
  %296 = vrot.lane.b32.xlu0 %v294, 32
  %v297 = vpop.permute.xlu0 %296
  %v299 = vsel %vm226, %v297, 0.0
  %v300 = vpack.c.bf16 %v299, %v299
  %v309 = vunpack.c.l.b16 %v198
  %v310 = vunpack.c.l.b16 %v199
  %v311 = vunpack.c.l.b16 %v200
  %v312 = vunpack.c.l.b16 %v201
  %v313 = vunpack.c.l.b16 %v202
  %v314 = vunpack.c.l.b16 %v203
  %v315 = vunpack.c.l.b16 %v204
  %v316 = vunpack.c.l.b16 %v205
  %v317 = vpack.c.b16 %v310, %v309
  %v318 = vpack.c.b16 %v312, %v311
  %v319 = vpack.c.b16 %v314, %v313
  %v320 = vpack.c.b16 %v316, %v315
  %vm325 = vcmask 523264
  %v327 = vsel %vm325, %v300, 0
  %329 = vmatprep.subr.bf16.mxu0 0
  %330 = vmatpush1.bf16.msra.mxu0 0
  %331 = vmatprep.subr.bf16.mxu0 0
  %332 = vmatpush1.bf16.msra.mxu0 0
  %333 = vmatprep.subr.bf16.mxu0 0
  %334 = vmatpush1.bf16.msra.mxu0 0
  %335 = vmatprep.subr.bf16.mxu0 0
  %336 = vmatpush1.bf16.msra.mxu0 0
  %337 = vmatprep.subr.bf16.mxu0 0
  %338 = vmatpush1.bf16.msra.mxu0 %v320
  %339 = vmatprep.subr.bf16.mxu0 0
  %340 = vmatpush1.bf16.msra.mxu0 %v319
  %341 = vmatprep.subr.bf16.mxu0 0
  %342 = vmatpush1.bf16.msra.mxu0 %v318
  %343 = vmatprep.subr.bf16.mxu0 0
  %344 = vmatpush1.bf16.msra.mxu0 %v317
  %345 = vmatprep.subr.bf16.mxu0 0
  %346 = vmatpush2.bf16.msra.mxu0 0
  %347 = vmatprep.subr.bf16.mxu0 0
  %348 = vmatpush2.bf16.msra.mxu0 0
  %349 = vmatprep.subr.bf16.mxu0 0
  %350 = vmatpush2.bf16.msra.mxu0 0
  %351 = vmatprep.subr.bf16.mxu0 0
  %352 = vmatpush2.bf16.msra.mxu0 0
  %353 = vmatprep.subr.bf16.mxu0 0
  %354 = vmatpush2.bf16.msra.mxu0 0
  %355 = vmatprep.subr.bf16.mxu0 0
  %356 = vmatpush2.bf16.msra.mxu0 0
  %357 = vmatprep.subr.bf16.mxu0 0
  %358 = vmatpush2.bf16.msra.mxu0 0
  %359 = vmatprep.subr.bf16.mxu0 0
  %360 = vmatpush2.bf16.msra.mxu0 0
  %361 = vmatprep.mubr.bf16.mxu0 0
  %362 = vmatmul.mubr.bf16.gmra.mxu0 %v327
  %v363 = vpop.f32.mrf.mxu0
  %v364 = vadd.f32 %v211, %v363
  %v365 = vpop.f32.mrf.mxu0
  %v366 = vpop.f32.mrf.mxu0
  %v367 = vpop.f32.mrf.mxu0
  %368 = vdwg.mxu0
  %v369 = vxor.u32 %v364, 2147483648
  %v370 = vmul.f32 %v369, 1.442695
  %v371 = vpow.pop %v370
  %v372 = vadd.f32 %v371, 1.0
  %v373 = vrcp.pop %v372
  %v374 = vmul.f32 1.0, %v373
  %v375 = vtanh.pop %v364
  %v376 = vmul.f32 %v374, 0.0
  %378 = vrot.lane.b32.xlu0 %v375, 64
  %v379 = vpop.permute.xlu0 %378
  %v381 = vmul.f32 %v374, %v379
  %383 = vrot.lane.b32.xlu0 %v381, 32
  %v384 = vpop.permute.xlu0 %383
  %v386 = vadd.f32 %v376, %v384
  %v387 = vtanh.pop %v386
  %389 = vrot.lane.b32.xlu0 %v387, 64
  %v390 = vpop.permute.xlu0 %389
  %v392 = vmul.f32 %v374, %v390
  %s393 = scalar_lea.vmem [#allocation2], 8
  %v394 = vld [vmem:[%s393] sm:$0xff]
  %v395 = vpack.c.bf16 %v294, %v294
  %397 = vrot.lane.b32.xlu0 %v395, 32
  %v398 = vpop.permute.xlu0 %397
  %v400 = vsel %vm226, %v398, 0
  %402 = vmatprep.subr.bf16.mxu0 0
  %403 = vmatpush1.bf16.msra.mxu0 0
  %404 = vmatprep.subr.bf16.mxu0 0
  %405 = vmatpush1.bf16.msra.mxu0 0
  %406 = vmatprep.subr.bf16.mxu0 0
  %407 = vmatpush1.bf16.msra.mxu0 0
  %408 = vmatprep.subr.bf16.mxu0 0
  %409 = vmatpush1.bf16.msra.mxu0 0
  %410 = vmatprep.subr.bf16.mxu0 0
  %411 = vmatpush1.bf16.msra.mxu0 0
  %412 = vmatprep.subr.bf16.mxu0 0
  %413 = vmatpush1.bf16.msra.mxu0 0
  %414 = vmatprep.subr.bf16.mxu0 0
  %415 = vmatpush1.bf16.msra.mxu0 %v223
  %416 = vmatprep.subr.bf16.mxu0 0
  %417 = vmatpush1.bf16.msra.mxu0 %v222
  %418 = vmatprep.subr.bf16.mxu0 0
  %419 = vmatpush2.bf16.msra.mxu0 0
  %420 = vmatprep.subr.bf16.mxu0 0
  %421 = vmatpush2.bf16.msra.mxu0 0
  %422 = vmatprep.subr.bf16.mxu0 0
  %423 = vmatpush2.bf16.msra.mxu0 0
  %424 = vmatprep.subr.bf16.mxu0 0
  %425 = vmatpush2.bf16.msra.mxu0 0
  %426 = vmatprep.subr.bf16.mxu0 0
  %427 = vmatpush2.bf16.msra.mxu0 0
  %428 = vmatprep.subr.bf16.mxu0 0
  %429 = vmatpush2.bf16.msra.mxu0 0
  %430 = vmatprep.subr.bf16.mxu0 0
  %431 = vmatpush2.bf16.msra.mxu0 0
  %432 = vmatprep.subr.bf16.mxu0 0
  %433 = vmatpush2.bf16.msra.mxu0 0
  %434 = vmatprep.mubr.bf16.mxu0 0
  %435 = vmatmul.mubr.bf16.gmra.mxu0 %v400
  %v436 = vpop.f32.mrf.mxu0
  %v437 = vadd.f32 0.0, %v436
  %v438 = vpop.f32.mrf.mxu0
  %v439 = vpop.f32.mrf.mxu0
  %v440 = vpop.f32.mrf.mxu0
  %441 = vdwg.mxu0
  %v442 = vadd.f32 %v394, %v437
  %v443 = vxor.u32 %v442, 2147483648
  %v444 = vmul.f32 %v443, 1.442695
  %v445 = vpow.pop %v444
  %v446 = vadd.f32 %v445, 1.0
  %v447 = vrcp.pop %v446
  %v448 = vmul.f32 1.0, %v447
  %v449 = vtanh.pop %v442
  %v450 = vmul.f32 %v448, %v288
  %452 = vrot.lane.b32.xlu0 %v449, 64
  %v453 = vpop.permute.xlu0 %452
  %v455 = vmul.f32 %v448, %v453
  %457 = vrot.lane.b32.xlu0 %v455, 32
  %v458 = vpop.permute.xlu0 %457
  %v460 = vadd.f32 %v450, %v458
  %v461 = vtanh.pop %v460
  %463 = vrot.lane.b32.xlu0 %v461, 64
  %v464 = vpop.permute.xlu0 %463
  %v466 = vmul.f32 %v448, %v464
  %468 = vrot.lane.b32.xlu0 %v466, 32
  %v469 = vpop.permute.xlu0 %468
  %472 = vrot.lane.b32.xlu0 %v392, 64
  %v473 = vpop.permute.xlu0 %472
  %v475 = vsel %vm226, %v469, %v473
  %v476 = vpack.c.bf16 %v475, %v475
  %v478 = vsel %vm325, %v476, 0
  %480 = vmatprep.subr.bf16.mxu0 0
  %481 = vmatpush1.bf16.msra.mxu0 0
  %482 = vmatprep.subr.bf16.mxu0 0
  %483 = vmatpush1.bf16.msra.mxu0 0
  %484 = vmatprep.subr.bf16.mxu0 0
  %485 = vmatpush1.bf16.msra.mxu0 0
  %486 = vmatprep.subr.bf16.mxu0 0
  %487 = vmatpush1.bf16.msra.mxu0 0
  %488 = vmatprep.subr.bf16.mxu0 0
  %489 = vmatpush1.bf16.msra.mxu0 %v320
  %490 = vmatprep.subr.bf16.mxu0 0
  %491 = vmatpush1.bf16.msra.mxu0 %v319
  %492 = vmatprep.subr.bf16.mxu0 0
  %493 = vmatpush1.bf16.msra.mxu0 %v318
  %494 = vmatprep.subr.bf16.mxu0 0
  %495 = vmatpush1.bf16.msra.mxu0 %v317
  %496 = vmatprep.subr.bf16.mxu0 0
  %497 = vmatpush2.bf16.msra.mxu0 0
  %498 = vmatprep.subr.bf16.mxu0 0
  %499 = vmatpush2.bf16.msra.mxu0 0
  %500 = vmatprep.subr.bf16.mxu0 0
  %501 = vmatpush2.bf16.msra.mxu0 0
  %502 = vmatprep.subr.bf16.mxu0 0
  %503 = vmatpush2.bf16.msra.mxu0 0
  %504 = vmatprep.subr.bf16.mxu0 0
  %505 = vmatpush2.bf16.msra.mxu0 0
  %506 = vmatprep.subr.bf16.mxu0 0
  %507 = vmatpush2.bf16.msra.mxu0 0
  %508 = vmatprep.subr.bf16.mxu0 0
  %509 = vmatpush2.bf16.msra.mxu0 0
  %510 = vmatprep.subr.bf16.mxu0 0
  %511 = vmatpush2.bf16.msra.mxu0 0
  %512 = vmatprep.mubr.bf16.mxu0 0
  %513 = vmatmul.mubr.bf16.gmra.mxu0 %v478
  %v514 = vpop.f32.mrf.mxu0
  %v515 = vadd.f32 %v211, %v514
  %v516 = vpop.f32.mrf.mxu0
  %v517 = vpop.f32.mrf.mxu0
  %v518 = vpop.f32.mrf.mxu0
  %519 = vdwg.mxu0
  %v520 = vxor.u32 %v515, 2147483648
  %v521 = vmul.f32 %v520, 1.442695
  %v522 = vpow.pop %v521
  %v523 = vadd.f32 %v522, 1.0
  %v524 = vrcp.pop %v523
  %v525 = vmul.f32 1.0, %v524
  %v526 = vtanh.pop %v515
  %v527 = vmul.f32 %v525, %v386
  %529 = vrot.lane.b32.xlu0 %v526, 64
  %v530 = vpop.permute.xlu0 %529
  %v532 = vmul.f32 %v525, %v530
  %534 = vrot.lane.b32.xlu0 %v532, 32
  %v535 = vpop.permute.xlu0 %534
  %v537 = vadd.f32 %v527, %v535
  %v538 = vtanh.pop %v537
  %540 = vrot.lane.b32.xlu0 %v538, 64
  %v541 = vpop.permute.xlu0 %540
  %v543 = vmul.f32 %v525, %v541
  %s544 = scalar_lea.vmem [#allocation2], 16
  %v545 = vld [vmem:[%s544] sm:$0xff]
  %v546 = vpack.c.bf16 %v466, %v466
  %548 = vrot.lane.b32.xlu0 %v546, 32
  %v549 = vpop.permute.xlu0 %548
  %v551 = vsel %vm226, %v549, 0
  %553 = vmatprep.subr.bf16.mxu0 0
  %554 = vmatpush1.bf16.msra.mxu0 0
  %555 = vmatprep.subr.bf16.mxu0 0
  %556 = vmatpush1.bf16.msra.mxu0 0
  %557 = vmatprep.subr.bf16.mxu0 0
  %558 = vmatpush1.bf16.msra.mxu0 0
  %559 = vmatprep.subr.bf16.mxu0 0
  %560 = vmatpush1.bf16.msra.mxu0 0
  %561 = vmatprep.subr.bf16.mxu0 0
  %562 = vmatpush1.bf16.msra.mxu0 0
  %563 = vmatprep.subr.bf16.mxu0 0
  %564 = vmatpush1.bf16.msra.mxu0 0
  %565 = vmatprep.subr.bf16.mxu0 0
  %566 = vmatpush1.bf16.msra.mxu0 %v223
  %567 = vmatprep.subr.bf16.mxu0 0
  %568 = vmatpush1.bf16.msra.mxu0 %v222
  %569 = vmatprep.subr.bf16.mxu0 0
  %570 = vmatpush2.bf16.msra.mxu0 0
  %571 = vmatprep.subr.bf16.mxu0 0
  %572 = vmatpush2.bf16.msra.mxu0 0
  %573 = vmatprep.subr.bf16.mxu0 0
  %574 = vmatpush2.bf16.msra.mxu0 0
  %575 = vmatprep.subr.bf16.mxu0 0
  %576 = vmatpush2.bf16.msra.mxu0 0
  %577 = vmatprep.subr.bf16.mxu0 0
  %578 = vmatpush2.bf16.msra.mxu0 0
  %579 = vmatprep.subr.bf16.mxu0 0
  %580 = vmatpush2.bf16.msra.mxu0 0
  %581 = vmatprep.subr.bf16.mxu0 0
  %582 = vmatpush2.bf16.msra.mxu0 0
  %583 = vmatprep.subr.bf16.mxu0 0
  %584 = vmatpush2.bf16.msra.mxu0 0
  %585 = vmatprep.mubr.bf16.mxu0 0
  %586 = vmatmul.mubr.bf16.gmra.mxu0 %v551
  %v587 = vpop.f32.mrf.mxu0
  %v588 = vadd.f32 0.0, %v587
  %v589 = vpop.f32.mrf.mxu0
  %v590 = vpop.f32.mrf.mxu0
  %v591 = vpop.f32.mrf.mxu0
  %592 = vdwg.mxu0
  %v593 = vadd.f32 %v545, %v588
  %v594 = vxor.u32 %v593, 2147483648
  %v595 = vmul.f32 %v594, 1.442695
  %v596 = vpow.pop %v595
  %v597 = vadd.f32 %v596, 1.0
  %v598 = vrcp.pop %v597
  %v599 = vmul.f32 1.0, %v598
  %v600 = vtanh.pop %v593
  %v601 = vmul.f32 %v599, %v460
  %603 = vrot.lane.b32.xlu0 %v600, 64
  %v604 = vpop.permute.xlu0 %603
  %v606 = vmul.f32 %v599, %v604
  %608 = vrot.lane.b32.xlu0 %v606, 32
  %v609 = vpop.permute.xlu0 %608
  %v611 = vadd.f32 %v601, %v609
  %v612 = vtanh.pop %v611
  %614 = vrot.lane.b32.xlu0 %v612, 64
  %v615 = vpop.permute.xlu0 %614
  %v617 = vmul.f32 %v599, %v615
  %619 = vrot.lane.b32.xlu0 %v617, 32
  %v620 = vpop.permute.xlu0 %619
  %623 = vrot.lane.b32.xlu0 %v543, 64
  %v624 = vpop.permute.xlu0 %623
  %v626 = vsel %vm226, %v620, %v624
  %v627 = vpack.c.bf16 %v626, %v626
  %v629 = vsel %vm325, %v627, 0
  %631 = vmatprep.subr.bf16.mxu0 0
  %632 = vmatpush1.bf16.msra.mxu0 0
  %633 = vmatprep.subr.bf16.mxu0 0
  %634 = vmatpush1.bf16.msra.mxu0 0
  %635 = vmatprep.subr.bf16.mxu0 0
  %636 = vmatpush1.bf16.msra.mxu0 0
  %637 = vmatprep.subr.bf16.mxu0 0
  %638 = vmatpush1.bf16.msra.mxu0 0
  %639 = vmatprep.subr.bf16.mxu0 0
  %640 = vmatpush1.bf16.msra.mxu0 %v320
  %641 = vmatprep.subr.bf16.mxu0 0
  %642 = vmatpush1.bf16.msra.mxu0 %v319
  %643 = vmatprep.subr.bf16.mxu0 0
  %644 = vmatpush1.bf16.msra.mxu0 %v318
  %645 = vmatprep.subr.bf16.mxu0 0
  %646 = vmatpush1.bf16.msra.mxu0 %v317
  %647 = vmatprep.subr.bf16.mxu0 0
  %648 = vmatpush2.bf16.msra.mxu0 0
  %649 = vmatprep.subr.bf16.mxu0 0
  %650 = vmatpush2.bf16.msra.mxu0 0
  %651 = vmatprep.subr.bf16.mxu0 0
  %652 = vmatpush2.bf16.msra.mxu0 0
  %653 = vmatprep.subr.bf16.mxu0 0
  %654 = vmatpush2.bf16.msra.mxu0 0
  %655 = vmatprep.subr.bf16.mxu0 0
  %656 = vmatpush2.bf16.msra.mxu0 0
  %657 = vmatprep.subr.bf16.mxu0 0
  %658 = vmatpush2.bf16.msra.mxu0 0
  %659 = vmatprep.subr.bf16.mxu0 0
  %660 = vmatpush2.bf16.msra.mxu0 0
  %661 = vmatprep.subr.bf16.mxu0 0
  %662 = vmatpush2.bf16.msra.mxu0 0
  %663 = vmatprep.mubr.bf16.mxu0 0
  %664 = vmatmul.mubr.bf16.gmra.mxu0 %v629
  %v665 = vpop.f32.mrf.mxu0
  %v666 = vadd.f32 %v211, %v665
  %v667 = vpop.f32.mrf.mxu0
  %v668 = vpop.f32.mrf.mxu0
  %v669 = vpop.f32.mrf.mxu0
  %670 = vdwg.mxu0
  %v671 = vxor.u32 %v666, 2147483648
  %v672 = vmul.f32 %v671, 1.442695
  %v673 = vpow.pop %v672
  %v674 = vadd.f32 %v673, 1.0
  %v675 = vrcp.pop %v674
  %v676 = vmul.f32 1.0, %v675
  %v677 = vtanh.pop %v666
  %v678 = vmul.f32 %v676, %v537
  %680 = vrot.lane.b32.xlu0 %v677, 64
  %v681 = vpop.permute.xlu0 %680
  %v683 = vmul.f32 %v676, %v681
  %685 = vrot.lane.b32.xlu0 %v683, 32
  %v686 = vpop.permute.xlu0 %685
  %v688 = vadd.f32 %v678, %v686
  %v689 = vtanh.pop %v688
  %691 = vrot.lane.b32.xlu0 %v689, 64
  %v692 = vpop.permute.xlu0 %691
  %v694 = vmul.f32 %v676, %v692
  %s695 = scalar_lea.vmem [#allocation2], 24
  %v696 = vld [vmem:[%s695] sm:$0xff]
  %v697 = vpack.c.bf16 %v617, %v617
  %699 = vrot.lane.b32.xlu0 %v697, 32
  %v700 = vpop.permute.xlu0 %699
  %v702 = vsel %vm226, %v700, 0
  %704 = vmatprep.subr.bf16.mxu0 0
  %705 = vmatpush1.bf16.msra.mxu0 0
  %706 = vmatprep.subr.bf16.mxu0 0
  %707 = vmatpush1.bf16.msra.mxu0 0
  %708 = vmatprep.subr.bf16.mxu0 0
  %709 = vmatpush1.bf16.msra.mxu0 0
  %710 = vmatprep.subr.bf16.mxu0 0
  %711 = vmatpush1.bf16.msra.mxu0 0
  %712 = vmatprep.subr.bf16.mxu0 0
  %713 = vmatpush1.bf16.msra.mxu0 0
  %714 = vmatprep.subr.bf16.mxu0 0
  %715 = vmatpush1.bf16.msra.mxu0 0
  %716 = vmatprep.subr.bf16.mxu0 0
  %717 = vmatpush1.bf16.msra.mxu0 %v223
  %718 = vmatprep.subr.bf16.mxu0 0
  %719 = vmatpush1.bf16.msra.mxu0 %v222
  %720 = vmatprep.subr.bf16.mxu0 0
  %721 = vmatpush2.bf16.msra.mxu0 0
  %722 = vmatprep.subr.bf16.mxu0 0
  %723 = vmatpush2.bf16.msra.mxu0 0
  %724 = vmatprep.subr.bf16.mxu0 0
  %725 = vmatpush2.bf16.msra.mxu0 0
  %726 = vmatprep.subr.bf16.mxu0 0
  %727 = vmatpush2.bf16.msra.mxu0 0
  %728 = vmatprep.subr.bf16.mxu0 0
  %729 = vmatpush2.bf16.msra.mxu0 0
  %730 = vmatprep.subr.bf16.mxu0 0
  %731 = vmatpush2.bf16.msra.mxu0 0
  %732 = vmatprep.subr.bf16.mxu0 0
  %733 = vmatpush2.bf16.msra.mxu0 0
  %734 = vmatprep.subr.bf16.mxu0 0
  %735 = vmatpush2.bf16.msra.mxu0 0
  %736 = vmatprep.mubr.bf16.mxu0 0
  %737 = vmatmul.mubr.bf16.gmra.mxu0 %v702
  %v738 = vpop.f32.mrf.mxu0
  %v739 = vadd.f32 0.0, %v738
  %v740 = vpop.f32.mrf.mxu0
  %v741 = vpop.f32.mrf.mxu0
  %v742 = vpop.f32.mrf.mxu0
  %743 = vdwg.mxu0
  %v744 = vadd.f32 %v696, %v739
  %v745 = vxor.u32 %v744, 2147483648
  %v746 = vmul.f32 %v745, 1.442695
  %v747 = vpow.pop %v746
  %v748 = vadd.f32 %v747, 1.0
  %v749 = vrcp.pop %v748
  %v750 = vmul.f32 1.0, %v749
  %v751 = vtanh.pop %v744
  %v752 = vmul.f32 %v750, %v611
  %754 = vrot.lane.b32.xlu0 %v751, 64
  %v755 = vpop.permute.xlu0 %754
  %v757 = vmul.f32 %v750, %v755
  %759 = vrot.lane.b32.xlu0 %v757, 32
  %v760 = vpop.permute.xlu0 %759
  %v762 = vadd.f32 %v752, %v760
  %v763 = vtanh.pop %v762
  %765 = vrot.lane.b32.xlu0 %v763, 64
  %v766 = vpop.permute.xlu0 %765
  %v768 = vmul.f32 %v750, %v766
  %770 = vrot.lane.b32.xlu0 %v768, 32
  %v771 = vpop.permute.xlu0 %770
  %774 = vrot.lane.b32.xlu0 %v694, 64
  %v775 = vpop.permute.xlu0 %774
  %v777 = vsel %vm226, %v771, %v775
  %v778 = vpack.c.bf16 %v777, %v777
  %v780 = vsel %vm325, %v778, 0
  %782 = vmatprep.subr.bf16.mxu0 0
  %783 = vmatpush1.bf16.msra.mxu0 0
  %784 = vmatprep.subr.bf16.mxu0 0
  %785 = vmatpush1.bf16.msra.mxu0 0
  %786 = vmatprep.subr.bf16.mxu0 0
  %787 = vmatpush1.bf16.msra.mxu0 0
  %788 = vmatprep.subr.bf16.mxu0 0
  %789 = vmatpush1.bf16.msra.mxu0 0
  %790 = vmatprep.subr.bf16.mxu0 0
  %791 = vmatpush1.bf16.msra.mxu0 %v320
  %792 = vmatprep.subr.bf16.mxu0 0
  %793 = vmatpush1.bf16.msra.mxu0 %v319
  %794 = vmatprep.subr.bf16.mxu0 0
  %795 = vmatpush1.bf16.msra.mxu0 %v318
  %796 = vmatprep.subr.bf16.mxu0 0
  %797 = vmatpush1.bf16.msra.mxu0 %v317
  %798 = vmatprep.subr.bf16.mxu0 0
  %799 = vmatpush2.bf16.msra.mxu0 0
  %800 = vmatprep.subr.bf16.mxu0 0
  %801 = vmatpush2.bf16.msra.mxu0 0
  %802 = vmatprep.subr.bf16.mxu0 0
  %803 = vmatpush2.bf16.msra.mxu0 0
  %804 = vmatprep.subr.bf16.mxu0 0
  %805 = vmatpush2.bf16.msra.mxu0 0
  %806 = vmatprep.subr.bf16.mxu0 0
  %807 = vmatpush2.bf16.msra.mxu0 0
  %808 = vmatprep.subr.bf16.mxu0 0
  %809 = vmatpush2.bf16.msra.mxu0 0
  %810 = vmatprep.subr.bf16.mxu0 0
  %811 = vmatpush2.bf16.msra.mxu0 0
  %812 = vmatprep.subr.bf16.mxu0 0
  %813 = vmatpush2.bf16.msra.mxu0 0
  %814 = vmatprep.mubr.bf16.mxu0 0
  %815 = vmatmul.mubr.bf16.gmra.mxu0 %v780
  %v816 = vpop.f32.mrf.mxu0
  %v817 = vadd.f32 %v211, %v816
  %v818 = vpop.f32.mrf.mxu0
  %v819 = vpop.f32.mrf.mxu0
  %v820 = vpop.f32.mrf.mxu0
  %821 = vdwg.mxu0
  %v822 = vxor.u32 %v817, 2147483648
  %v823 = vmul.f32 %v822, 1.442695
  %v824 = vpow.pop %v823
  %v825 = vadd.f32 %v824, 1.0
  %v826 = vrcp.pop %v825
  %v827 = vmul.f32 1.0, %v826
  %v828 = vtanh.pop %v817
  %v829 = vmul.f32 %v827, %v688
  %831 = vrot.lane.b32.xlu0 %v828, 64
  %v832 = vpop.permute.xlu0 %831
  %v834 = vmul.f32 %v827, %v832
  %836 = vrot.lane.b32.xlu0 %v834, 32
  %v837 = vpop.permute.xlu0 %836
  %v839 = vadd.f32 %v829, %v837
  %v840 = vtanh.pop %v839
  %842 = vrot.lane.b32.xlu0 %v840, 64
  %v843 = vpop.permute.xlu0 %842
  %v845 = vmul.f32 %v827, %v843
  %s846 = scalar_lea.vmem [#allocation2], 32
  %v847 = vld [vmem:[%s846] sm:$0xff]
  %v848 = vpack.c.bf16 %v768, %v768
  %850 = vrot.lane.b32.xlu0 %v848, 32
  %v851 = vpop.permute.xlu0 %850
  %v853 = vsel %vm226, %v851, 0
  %855 = vmatprep.subr.bf16.mxu0 0
  %856 = vmatpush1.bf16.msra.mxu0 0
  %857 = vmatprep.subr.bf16.mxu0 0
  %858 = vmatpush1.bf16.msra.mxu0 0
  %859 = vmatprep.subr.bf16.mxu0 0
  %860 = vmatpush1.bf16.msra.mxu0 0
  %861 = vmatprep.subr.bf16.mxu0 0
  %862 = vmatpush1.bf16.msra.mxu0 0
  %863 = vmatprep.subr.bf16.mxu0 0
  %864 = vmatpush1.bf16.msra.mxu0 0
  %865 = vmatprep.subr.bf16.mxu0 0
  %866 = vmatpush1.bf16.msra.mxu0 0
  %867 = vmatprep.subr.bf16.mxu0 0
  %868 = vmatpush1.bf16.msra.mxu0 %v223
  %869 = vmatprep.subr.bf16.mxu0 0
  %870 = vmatpush1.bf16.msra.mxu0 %v222
  %871 = vmatprep.subr.bf16.mxu0 0
  %872 = vmatpush2.bf16.msra.mxu0 0
  %873 = vmatprep.subr.bf16.mxu0 0
  %874 = vmatpush2.bf16.msra.mxu0 0
  %875 = vmatprep.subr.bf16.mxu0 0
  %876 = vmatpush2.bf16.msra.mxu0 0
  %877 = vmatprep.subr.bf16.mxu0 0
  %878 = vmatpush2.bf16.msra.mxu0 0
  %879 = vmatprep.subr.bf16.mxu0 0
  %880 = vmatpush2.bf16.msra.mxu0 0
  %881 = vmatprep.subr.bf16.mxu0 0
  %882 = vmatpush2.bf16.msra.mxu0 0
  %883 = vmatprep.subr.bf16.mxu0 0
  %884 = vmatpush2.bf16.msra.mxu0 0
  %885 = vmatprep.subr.bf16.mxu0 0
  %886 = vmatpush2.bf16.msra.mxu0 0
  %887 = vmatprep.mubr.bf16.mxu0 0
  %888 = vmatmul.mubr.bf16.gmra.mxu0 %v853
  %v889 = vpop.f32.mrf.mxu0
  %v890 = vadd.f32 0.0, %v889
  %v891 = vpop.f32.mrf.mxu0
  %v892 = vpop.f32.mrf.mxu0
  %v893 = vpop.f32.mrf.mxu0
  %894 = vdwg.mxu0
  %v895 = vadd.f32 %v847, %v890
  %v896 = vxor.u32 %v895, 2147483648
  %v897 = vmul.f32 %v896, 1.442695
  %v898 = vpow.pop %v897
  %v899 = vadd.f32 %v898, 1.0
  %v900 = vrcp.pop %v899
  %v901 = vmul.f32 1.0, %v900
  %v902 = vtanh.pop %v895
  %v903 = vmul.f32 %v901, %v762
  %905 = vrot.lane.b32.xlu0 %v902, 64
  %v906 = vpop.permute.xlu0 %905
  %v908 = vmul.f32 %v901, %v906
  %910 = vrot.lane.b32.xlu0 %v908, 32
  %v911 = vpop.permute.xlu0 %910
  %v913 = vadd.f32 %v903, %v911
  %v914 = vtanh.pop %v913
  %916 = vrot.lane.b32.xlu0 %v914, 64
  %v917 = vpop.permute.xlu0 %916
  %v919 = vmul.f32 %v901, %v917
  %921 = vrot.lane.b32.xlu0 %v919, 32
  %v922 = vpop.permute.xlu0 %921
  %925 = vrot.lane.b32.xlu0 %v845, 64
  %v926 = vpop.permute.xlu0 %925
  %v928 = vsel %vm226, %v922, %v926
  %v929 = vpack.c.bf16 %v928, %v928
  %v931 = vsel %vm325, %v929, 0
  %933 = vmatprep.subr.bf16.mxu0 0
  %934 = vmatpush1.bf16.msra.mxu0 0
  %935 = vmatprep.subr.bf16.mxu0 0
  %936 = vmatpush1.bf16.msra.mxu0 0
  %937 = vmatprep.subr.bf16.mxu0 0
  %938 = vmatpush1.bf16.msra.mxu0 0
  %939 = vmatprep.subr.bf16.mxu0 0
  %940 = vmatpush1.bf16.msra.mxu0 0
  %941 = vmatprep.subr.bf16.mxu0 0
  %942 = vmatpush1.bf16.msra.mxu0 %v320
  %943 = vmatprep.subr.bf16.mxu0 0
  %944 = vmatpush1.bf16.msra.mxu0 %v319
  %945 = vmatprep.subr.bf16.mxu0 0
  %946 = vmatpush1.bf16.msra.mxu0 %v318
  %947 = vmatprep.subr.bf16.mxu0 0
  %948 = vmatpush1.bf16.msra.mxu0 %v317
  %949 = vmatprep.subr.bf16.mxu0 0
  %950 = vmatpush2.bf16.msra.mxu0 0
  %951 = vmatprep.subr.bf16.mxu0 0
  %952 = vmatpush2.bf16.msra.mxu0 0
  %953 = vmatprep.subr.bf16.mxu0 0
  %954 = vmatpush2.bf16.msra.mxu0 0
  %955 = vmatprep.subr.bf16.mxu0 0
  %956 = vmatpush2.bf16.msra.mxu0 0
  %957 = vmatprep.subr.bf16.mxu0 0
  %958 = vmatpush2.bf16.msra.mxu0 0
  %959 = vmatprep.subr.bf16.mxu0 0
  %960 = vmatpush2.bf16.msra.mxu0 0
  %961 = vmatprep.subr.bf16.mxu0 0
  %962 = vmatpush2.bf16.msra.mxu0 0
  %963 = vmatprep.subr.bf16.mxu0 0
  %964 = vmatpush2.bf16.msra.mxu0 0
  %965 = vmatprep.mubr.bf16.mxu0 0
  %966 = vmatmul.mubr.bf16.gmra.mxu0 %v931
  %v967 = vpop.f32.mrf.mxu0
  %v968 = vadd.f32 %v211, %v967
  %v969 = vpop.f32.mrf.mxu0
  %v970 = vpop.f32.mrf.mxu0
  %v971 = vpop.f32.mrf.mxu0
  %972 = vdwg.mxu0
  %v973 = vxor.u32 %v968, 2147483648
  %v974 = vmul.f32 %v973, 1.442695
  %v975 = vpow.pop %v974
  %v976 = vadd.f32 %v975, 1.0
  %v977 = vrcp.pop %v976
  %v978 = vmul.f32 1.0, %v977
  %v979 = vtanh.pop %v968
  %v980 = vmul.f32 %v978, %v839
  %982 = vrot.lane.b32.xlu0 %v979, 64
  %v983 = vpop.permute.xlu0 %982
  %v985 = vmul.f32 %v978, %v983
  %987 = vrot.lane.b32.xlu0 %v985, 32
  %v988 = vpop.permute.xlu0 %987
  %v990 = vadd.f32 %v980, %v988
  %v991 = vtanh.pop %v990
  %993 = vrot.lane.b32.xlu0 %v991, 64
  %v994 = vpop.permute.xlu0 %993
  %v996 = vmul.f32 %v978, %v994
  %s997 = scalar_lea.vmem [#allocation2], 40
  %v998 = vld [vmem:[%s997] sm:$0xff]
  %v999 = vpack.c.bf16 %v919, %v919
  %1001 = vrot.lane.b32.xlu0 %v999, 32
  %v1002 = vpop.permute.xlu0 %1001
  %v1004 = vsel %vm226, %v1002, 0
  %1006 = vmatprep.subr.bf16.mxu0 0
  %1007 = vmatpush1.bf16.msra.mxu0 0
  %1008 = vmatprep.subr.bf16.mxu0 0
  %1009 = vmatpush1.bf16.msra.mxu0 0
  %1010 = vmatprep.subr.bf16.mxu0 0
  %1011 = vmatpush1.bf16.msra.mxu0 0
  %1012 = vmatprep.subr.bf16.mxu0 0
  %1013 = vmatpush1.bf16.msra.mxu0 0
  %1014 = vmatprep.subr.bf16.mxu0 0
  %1015 = vmatpush1.bf16.msra.mxu0 0
  %1016 = vmatprep.subr.bf16.mxu0 0
  %1017 = vmatpush1.bf16.msra.mxu0 0
  %1018 = vmatprep.subr.bf16.mxu0 0
  %1019 = vmatpush1.bf16.msra.mxu0 %v223
  %1020 = vmatprep.subr.bf16.mxu0 0
  %1021 = vmatpush1.bf16.msra.mxu0 %v222
  %1022 = vmatprep.subr.bf16.mxu0 0
  %1023 = vmatpush2.bf16.msra.mxu0 0
  %1024 = vmatprep.subr.bf16.mxu0 0
  %1025 = vmatpush2.bf16.msra.mxu0 0
  %1026 = vmatprep.subr.bf16.mxu0 0
  %1027 = vmatpush2.bf16.msra.mxu0 0
  %1028 = vmatprep.subr.bf16.mxu0 0
  %1029 = vmatpush2.bf16.msra.mxu0 0
  %1030 = vmatprep.subr.bf16.mxu0 0
  %1031 = vmatpush2.bf16.msra.mxu0 0
  %1032 = vmatprep.subr.bf16.mxu0 0
  %1033 = vmatpush2.bf16.msra.mxu0 0
  %1034 = vmatprep.subr.bf16.mxu0 0
  %1035 = vmatpush2.bf16.msra.mxu0 0
  %1036 = vmatprep.subr.bf16.mxu0 0
  %1037 = vmatpush2.bf16.msra.mxu0 0
  %1038 = vmatprep.mubr.bf16.mxu0 0
  %1039 = vmatmul.mubr.bf16.gmra.mxu0 %v1004
  %v1040 = vpop.f32.mrf.mxu0
  %v1041 = vadd.f32 0.0, %v1040
  %v1042 = vpop.f32.mrf.mxu0
  %v1043 = vpop.f32.mrf.mxu0
  %v1044 = vpop.f32.mrf.mxu0
  %1045 = vdwg.mxu0
  %v1046 = vadd.f32 %v998, %v1041
  %v1047 = vxor.u32 %v1046, 2147483648
  %v1048 = vmul.f32 %v1047, 1.442695
  %v1049 = vpow.pop %v1048
  %v1050 = vadd.f32 %v1049, 1.0
  %v1051 = vrcp.pop %v1050
  %v1052 = vmul.f32 1.0, %v1051
  %v1053 = vtanh.pop %v1046
  %v1054 = vmul.f32 %v1052, %v913
  %1056 = vrot.lane.b32.xlu0 %v1053, 64
  %v1057 = vpop.permute.xlu0 %1056
  %v1059 = vmul.f32 %v1052, %v1057
  %1061 = vrot.lane.b32.xlu0 %v1059, 32
  %v1062 = vpop.permute.xlu0 %1061
  %v1064 = vadd.f32 %v1054, %v1062
  %v1065 = vtanh.pop %v1064
  %1067 = vrot.lane.b32.xlu0 %v1065, 64
  %v1068 = vpop.permute.xlu0 %1067
  %v1070 = vmul.f32 %v1052, %v1068
  %1072 = vrot.lane.b32.xlu0 %v1070, 32
  %v1073 = vpop.permute.xlu0 %1072
  %1076 = vrot.lane.b32.xlu0 %v996, 64
  %v1077 = vpop.permute.xlu0 %1076
  %v1079 = vsel %vm226, %v1073, %v1077
  %v1080 = vpack.c.bf16 %v1079, %v1079
  %v1082 = vsel %vm325, %v1080, 0
  %1084 = vmatprep.subr.bf16.mxu0 0
  %1085 = vmatpush1.bf16.msra.mxu0 0
  %1086 = vmatprep.subr.bf16.mxu0 0
  %1087 = vmatpush1.bf16.msra.mxu0 0
  %1088 = vmatprep.subr.bf16.mxu0 0
  %1089 = vmatpush1.bf16.msra.mxu0 0
  %1090 = vmatprep.subr.bf16.mxu0 0
  %1091 = vmatpush1.bf16.msra.mxu0 0
  %1092 = vmatprep.subr.bf16.mxu0 0
  %1093 = vmatpush1.bf16.msra.mxu0 %v320
  %1094 = vmatprep.subr.bf16.mxu0 0
  %1095 = vmatpush1.bf16.msra.mxu0 %v319
  %1096 = vmatprep.subr.bf16.mxu0 0
  %1097 = vmatpush1.bf16.msra.mxu0 %v318
  %1098 = vmatprep.subr.bf16.mxu0 0
  %1099 = vmatpush1.bf16.msra.mxu0 %v317
  %1100 = vmatprep.subr.bf16.mxu0 0
  %1101 = vmatpush2.bf16.msra.mxu0 0
  %1102 = vmatprep.subr.bf16.mxu0 0
  %1103 = vmatpush2.bf16.msra.mxu0 0
  %1104 = vmatprep.subr.bf16.mxu0 0
  %1105 = vmatpush2.bf16.msra.mxu0 0
  %1106 = vmatprep.subr.bf16.mxu0 0
  %1107 = vmatpush2.bf16.msra.mxu0 0
  %1108 = vmatprep.subr.bf16.mxu0 0
  %1109 = vmatpush2.bf16.msra.mxu0 0
  %1110 = vmatprep.subr.bf16.mxu0 0
  %1111 = vmatpush2.bf16.msra.mxu0 0
  %1112 = vmatprep.subr.bf16.mxu0 0
  %1113 = vmatpush2.bf16.msra.mxu0 0
  %1114 = vmatprep.subr.bf16.mxu0 0
  %1115 = vmatpush2.bf16.msra.mxu0 0
  %1116 = vmatprep.mubr.bf16.mxu0 0
  %1117 = vmatmul.mubr.bf16.gmra.mxu0 %v1082
  %v1118 = vpop.f32.mrf.mxu0
  %v1119 = vadd.f32 %v211, %v1118
  %v1120 = vpop.f32.mrf.mxu0
  %v1121 = vpop.f32.mrf.mxu0
  %v1122 = vpop.f32.mrf.mxu0
  %1123 = vdwg.mxu0
  %v1124 = vxor.u32 %v1119, 2147483648
  %v1125 = vmul.f32 %v1124, 1.442695
  %v1126 = vpow.pop %v1125
  %v1127 = vadd.f32 %v1126, 1.0
  %v1128 = vrcp.pop %v1127
  %v1129 = vmul.f32 1.0, %v1128
  %v1130 = vtanh.pop %v1119
  %v1131 = vmul.f32 %v1129, %v990
  %1133 = vrot.lane.b32.xlu0 %v1130, 64
  %v1134 = vpop.permute.xlu0 %1133
  %v1136 = vmul.f32 %v1129, %v1134
  %1138 = vrot.lane.b32.xlu0 %v1136, 32
  %v1139 = vpop.permute.xlu0 %1138
  %v1141 = vadd.f32 %v1131, %v1139
  %v1142 = vtanh.pop %v1141
  %1144 = vrot.lane.b32.xlu0 %v1142, 64
  %v1145 = vpop.permute.xlu0 %1144
  %v1147 = vmul.f32 %v1129, %v1145
  %s1148 = scalar_lea.vmem [#allocation2], 48
  %v1149 = vld [vmem:[%s1148] sm:$0xff]
  %v1150 = vpack.c.bf16 %v1070, %v1070
  %1152 = vrot.lane.b32.xlu0 %v1150, 32
  %v1153 = vpop.permute.xlu0 %1152
  %v1155 = vsel %vm226, %v1153, 0
  %1157 = vmatprep.subr.bf16.mxu0 0
  %1158 = vmatpush1.bf16.msra.mxu0 0
  %1159 = vmatprep.subr.bf16.mxu0 0
  %1160 = vmatpush1.bf16.msra.mxu0 0
  %1161 = vmatprep.subr.bf16.mxu0 0
  %1162 = vmatpush1.bf16.msra.mxu0 0
  %1163 = vmatprep.subr.bf16.mxu0 0
  %1164 = vmatpush1.bf16.msra.mxu0 0
  %1165 = vmatprep.subr.bf16.mxu0 0
  %1166 = vmatpush1.bf16.msra.mxu0 0
  %1167 = vmatprep.subr.bf16.mxu0 0
  %1168 = vmatpush1.bf16.msra.mxu0 0
  %1169 = vmatprep.subr.bf16.mxu0 0
  %1170 = vmatpush1.bf16.msra.mxu0 %v223
  %1171 = vmatprep.subr.bf16.mxu0 0
  %1172 = vmatpush1.bf16.msra.mxu0 %v222
  %1173 = vmatprep.subr.bf16.mxu0 0
  %1174 = vmatpush2.bf16.msra.mxu0 0
  %1175 = vmatprep.subr.bf16.mxu0 0
  %1176 = vmatpush2.bf16.msra.mxu0 0
  %1177 = vmatprep.subr.bf16.mxu0 0
  %1178 = vmatpush2.bf16.msra.mxu0 0
  %1179 = vmatprep.subr.bf16.mxu0 0
  %1180 = vmatpush2.bf16.msra.mxu0 0
  %1181 = vmatprep.subr.bf16.mxu0 0
  %1182 = vmatpush2.bf16.msra.mxu0 0
  %1183 = vmatprep.subr.bf16.mxu0 0
  %1184 = vmatpush2.bf16.msra.mxu0 0
  %1185 = vmatprep.subr.bf16.mxu0 0
  %1186 = vmatpush2.bf16.msra.mxu0 0
  %1187 = vmatprep.subr.bf16.mxu0 0
  %1188 = vmatpush2.bf16.msra.mxu0 0
  %1189 = vmatprep.mubr.bf16.mxu0 0
  %1190 = vmatmul.mubr.bf16.gmra.mxu0 %v1155
  %v1191 = vpop.f32.mrf.mxu0
  %v1192 = vadd.f32 0.0, %v1191
  %v1193 = vpop.f32.mrf.mxu0
  %v1194 = vpop.f32.mrf.mxu0
  %v1195 = vpop.f32.mrf.mxu0
  %1196 = vdwg.mxu0
  %v1197 = vadd.f32 %v1149, %v1192
  %v1198 = vxor.u32 %v1197, 2147483648
  %v1199 = vmul.f32 %v1198, 1.442695
  %v1200 = vpow.pop %v1199
  %v1201 = vadd.f32 %v1200, 1.0
  %v1202 = vrcp.pop %v1201
  %v1203 = vmul.f32 1.0, %v1202
  %v1204 = vtanh.pop %v1197
  %v1205 = vmul.f32 %v1203, %v1064
  %1207 = vrot.lane.b32.xlu0 %v1204, 64
  %v1208 = vpop.permute.xlu0 %1207
  %v1210 = vmul.f32 %v1203, %v1208
  %1212 = vrot.lane.b32.xlu0 %v1210, 32
  %v1213 = vpop.permute.xlu0 %1212
  %v1215 = vadd.f32 %v1205, %v1213
  %v1216 = vtanh.pop %v1215
  %1218 = vrot.lane.b32.xlu0 %v1216, 64
  %v1219 = vpop.permute.xlu0 %1218
  %v1221 = vmul.f32 %v1203, %v1219
  %1223 = vrot.lane.b32.xlu0 %v1221, 32
  %v1224 = vpop.permute.xlu0 %1223
  %1227 = vrot.lane.b32.xlu0 %v1147, 64
  %v1228 = vpop.permute.xlu0 %1227
  %v1230 = vsel %vm226, %v1224, %v1228
  %v1231 = vpack.c.bf16 %v1230, %v1230
  %v1233 = vsel %vm325, %v1231, 0
  %1235 = vmatprep.subr.bf16.mxu0 0
  %1236 = vmatpush1.bf16.msra.mxu0 0
  %1237 = vmatprep.subr.bf16.mxu0 0
  %1238 = vmatpush1.bf16.msra.mxu0 0
  %1239 = vmatprep.subr.bf16.mxu0 0
  %1240 = vmatpush1.bf16.msra.mxu0 0
  %1241 = vmatprep.subr.bf16.mxu0 0
  %1242 = vmatpush1.bf16.msra.mxu0 0
  %1243 = vmatprep.subr.bf16.mxu0 0
  %1244 = vmatpush1.bf16.msra.mxu0 %v320
  %1245 = vmatprep.subr.bf16.mxu0 0
  %1246 = vmatpush1.bf16.msra.mxu0 %v319
  %1247 = vmatprep.subr.bf16.mxu0 0
  %1248 = vmatpush1.bf16.msra.mxu0 %v318
  %1249 = vmatprep.subr.bf16.mxu0 0
  %1250 = vmatpush1.bf16.msra.mxu0 %v317
  %1251 = vmatprep.subr.bf16.mxu0 0
  %1252 = vmatpush2.bf16.msra.mxu0 0
  %1253 = vmatprep.subr.bf16.mxu0 0
  %1254 = vmatpush2.bf16.msra.mxu0 0
  %1255 = vmatprep.subr.bf16.mxu0 0
  %1256 = vmatpush2.bf16.msra.mxu0 0
  %1257 = vmatprep.subr.bf16.mxu0 0
  %1258 = vmatpush2.bf16.msra.mxu0 0
  %1259 = vmatprep.subr.bf16.mxu0 0
  %1260 = vmatpush2.bf16.msra.mxu0 0
  %1261 = vmatprep.subr.bf16.mxu0 0
  %1262 = vmatpush2.bf16.msra.mxu0 0
  %1263 = vmatprep.subr.bf16.mxu0 0
  %1264 = vmatpush2.bf16.msra.mxu0 0
  %1265 = vmatprep.subr.bf16.mxu0 0
  %1266 = vmatpush2.bf16.msra.mxu0 0
  %1267 = vmatprep.mubr.bf16.mxu0 0
  %1268 = vmatmul.mubr.bf16.gmra.mxu0 %v1233
  %v1269 = vpop.f32.mrf.mxu0
  %v1270 = vadd.f32 %v211, %v1269
  %v1271 = vpop.f32.mrf.mxu0
  %v1272 = vpop.f32.mrf.mxu0
  %v1273 = vpop.f32.mrf.mxu0
  %1274 = vdwg.mxu0
  %v1275 = vxor.u32 %v1270, 2147483648
  %v1276 = vmul.f32 %v1275, 1.442695
  %v1277 = vpow.pop %v1276
  %v1278 = vadd.f32 %v1277, 1.0
  %v1279 = vrcp.pop %v1278
  %v1280 = vmul.f32 1.0, %v1279
  %v1281 = vtanh.pop %v1270
  %v1282 = vmul.f32 %v1280, %v1141
  %1284 = vrot.lane.b32.xlu0 %v1281, 64
  %v1285 = vpop.permute.xlu0 %1284
  %v1287 = vmul.f32 %v1280, %v1285
  %1289 = vrot.lane.b32.xlu0 %v1287, 32
  %v1290 = vpop.permute.xlu0 %1289
  %v1292 = vadd.f32 %v1282, %v1290
  %v1293 = vtanh.pop %v1292
  %1295 = vrot.lane.b32.xlu0 %v1293, 64
  %v1296 = vpop.permute.xlu0 %1295
  %v1298 = vmul.f32 %v1280, %v1296
  %s1299 = scalar_lea.vmem [#allocation2], 56
  %v1300 = vld [vmem:[%s1299] sm:$0xff]
  %v1301 = vpack.c.bf16 %v1221, %v1221
  %1303 = vrot.lane.b32.xlu0 %v1301, 32
  %v1304 = vpop.permute.xlu0 %1303
  %v1306 = vsel %vm226, %v1304, 0
  %1308 = vmatprep.subr.bf16.mxu0 0
  %1309 = vmatpush1.bf16.msra.mxu0 0
  %1310 = vmatprep.subr.bf16.mxu0 0
  %1311 = vmatpush1.bf16.msra.mxu0 0
  %1312 = vmatprep.subr.bf16.mxu0 0
  %1313 = vmatpush1.bf16.msra.mxu0 0
  %1314 = vmatprep.subr.bf16.mxu0 0
  %1315 = vmatpush1.bf16.msra.mxu0 0
  %1316 = vmatprep.subr.bf16.mxu0 0
  %1317 = vmatpush1.bf16.msra.mxu0 0
  %1318 = vmatprep.subr.bf16.mxu0 0
  %1319 = vmatpush1.bf16.msra.mxu0 0
  %1320 = vmatprep.subr.bf16.mxu0 0
  %1321 = vmatpush1.bf16.msra.mxu0 %v223
  %1322 = vmatprep.subr.bf16.mxu0 0
  %1323 = vmatpush1.bf16.msra.mxu0 %v222
  %1324 = vmatprep.subr.bf16.mxu0 0
  %1325 = vmatpush2.bf16.msra.mxu0 0
  %1326 = vmatprep.subr.bf16.mxu0 0
  %1327 = vmatpush2.bf16.msra.mxu0 0
  %1328 = vmatprep.subr.bf16.mxu0 0
  %1329 = vmatpush2.bf16.msra.mxu0 0
  %1330 = vmatprep.subr.bf16.mxu0 0
  %1331 = vmatpush2.bf16.msra.mxu0 0
  %1332 = vmatprep.subr.bf16.mxu0 0
  %1333 = vmatpush2.bf16.msra.mxu0 0
  %1334 = vmatprep.subr.bf16.mxu0 0
  %1335 = vmatpush2.bf16.msra.mxu0 0
  %1336 = vmatprep.subr.bf16.mxu0 0
  %1337 = vmatpush2.bf16.msra.mxu0 0
  %1338 = vmatprep.subr.bf16.mxu0 0
  %1339 = vmatpush2.bf16.msra.mxu0 0
  %1340 = vmatprep.mubr.bf16.mxu0 0
  %1341 = vmatmul.mubr.bf16.gmra.mxu0 %v1306
  %v1342 = vpop.f32.mrf.mxu0
  %v1343 = vadd.f32 0.0, %v1342
  %v1344 = vpop.f32.mrf.mxu0
  %v1345 = vpop.f32.mrf.mxu0
  %v1346 = vpop.f32.mrf.mxu0
  %1347 = vdwg.mxu0
  %v1348 = vadd.f32 %v1300, %v1343
  %v1349 = vxor.u32 %v1348, 2147483648
  %v1350 = vmul.f32 %v1349, 1.442695
  %v1351 = vpow.pop %v1350
  %v1352 = vadd.f32 %v1351, 1.0
  %v1353 = vrcp.pop %v1352
  %v1354 = vmul.f32 1.0, %v1353
  %v1355 = vtanh.pop %v1348
  %v1356 = vmul.f32 %v1354, %v1215
  %1358 = vrot.lane.b32.xlu0 %v1355, 64
  %v1359 = vpop.permute.xlu0 %1358
  %v1361 = vmul.f32 %v1354, %v1359
  %1363 = vrot.lane.b32.xlu0 %v1361, 32
  %v1364 = vpop.permute.xlu0 %1363
  %v1366 = vadd.f32 %v1356, %v1364
  %v1367 = vtanh.pop %v1366
  %1369 = vrot.lane.b32.xlu0 %v1367, 64
  %v1370 = vpop.permute.xlu0 %1369
  %v1372 = vmul.f32 %v1354, %v1370
  %1374 = vrot.lane.b32.xlu0 %v1372, 32
  %v1375 = vpop.permute.xlu0 %1374
  %1378 = vrot.lane.b32.xlu0 %v1298, 64
  %v1379 = vpop.permute.xlu0 %1378
  %v1381 = vsel %vm226, %v1375, %v1379
  %v1382 = vpack.c.bf16 %v1381, %v1381
  %v1384 = vsel %vm325, %v1382, 0
  %1386 = vmatprep.subr.bf16.mxu0 0
  %1387 = vmatpush1.bf16.msra.mxu0 0
  %1388 = vmatprep.subr.bf16.mxu0 0
  %1389 = vmatpush1.bf16.msra.mxu0 0
  %1390 = vmatprep.subr.bf16.mxu0 0
  %1391 = vmatpush1.bf16.msra.mxu0 0
  %1392 = vmatprep.subr.bf16.mxu0 0
  %1393 = vmatpush1.bf16.msra.mxu0 0
  %1394 = vmatprep.subr.bf16.mxu0 0
  %1395 = vmatpush1.bf16.msra.mxu0 %v320
  %1396 = vmatprep.subr.bf16.mxu0 0
  %1397 = vmatpush1.bf16.msra.mxu0 %v319
  %1398 = vmatprep.subr.bf16.mxu0 0
  %1399 = vmatpush1.bf16.msra.mxu0 %v318
  %1400 = vmatprep.subr.bf16.mxu0 0
  %1401 = vmatpush1.bf16.msra.mxu0 %v317
  %1402 = vmatprep.subr.bf16.mxu0 0
  %1403 = vmatpush2.bf16.msra.mxu0 0
  %1404 = vmatprep.subr.bf16.mxu0 0
  %1405 = vmatpush2.bf16.msra.mxu0 0
  %1406 = vmatprep.subr.bf16.mxu0 0
  %1407 = vmatpush2.bf16.msra.mxu0 0
  %1408 = vmatprep.subr.bf16.mxu0 0
  %1409 = vmatpush2.bf16.msra.mxu0 0
  %1410 = vmatprep.subr.bf16.mxu0 0
  %1411 = vmatpush2.bf16.msra.mxu0 0
  %1412 = vmatprep.subr.bf16.mxu0 0
  %1413 = vmatpush2.bf16.msra.mxu0 0
  %1414 = vmatprep.subr.bf16.mxu0 0
  %1415 = vmatpush2.bf16.msra.mxu0 0
  %1416 = vmatprep.subr.bf16.mxu0 0
  %1417 = vmatpush2.bf16.msra.mxu0 0
  %1418 = vmatprep.mubr.bf16.mxu0 0
  %1419 = vmatmul.mubr.bf16.gmra.mxu0 %v1384
  %v1420 = vpop.f32.mrf.mxu0
  %v1421 = vadd.f32 %v211, %v1420
  %v1422 = vpop.f32.mrf.mxu0
  %v1423 = vpop.f32.mrf.mxu0
  %v1424 = vpop.f32.mrf.mxu0
  %1425 = vdwg.mxu0
  %v1426 = vxor.u32 %v1421, 2147483648
  %v1427 = vmul.f32 %v1426, 1.442695
  %v1428 = vpow.pop %v1427
  %v1429 = vadd.f32 %v1428, 1.0
  %v1430 = vrcp.pop %v1429
  %v1431 = vmul.f32 1.0, %v1430
  %v1432 = vtanh.pop %v1421
  %v1433 = vmul.f32 %v1431, %v1292
  %1435 = vrot.lane.b32.xlu0 %v1432, 64
  %v1436 = vpop.permute.xlu0 %1435
  %v1438 = vmul.f32 %v1431, %v1436
  %1440 = vrot.lane.b32.xlu0 %v1438, 32
  %v1441 = vpop.permute.xlu0 %1440
  %v1443 = vadd.f32 %v1433, %v1441
  %v1444 = vtanh.pop %v1443
  %1446 = vrot.lane.b32.xlu0 %v1444, 64
  %v1447 = vpop.permute.xlu0 %1446
  %v1449 = vmul.f32 %v1431, %v1447
  %v1450 = vld [vmem:[%s6] sm:$0xff]
  %v1451 = vld [vmem:[%s6 + $0x8] sm:$0xff]
  %v1452 = vld [vmem:[%s6 + $0x10] sm:$0xff]
  %v1453 = vld [vmem:[%s6 + $0x18] sm:$0xff]
  %v1454 = vld [vmem:[%s7] sm:$0x1]
  %v1456 = vlaneseq
  %v1457 = vshrl.u32 %v1456, 7
  %v1458 = vsub.s32 0, %v1457
  %v1459 = vrot.slane %v1454, %v1458
  %1462 = vrot.lane.b32.xlu0 %v1449, 32
  %v1463 = vpop.permute.xlu0 %1462
  %v1464 = vsel %vm226, %v1463, 0
  %1466 = vmatprep.subr.mxu0 0.0
  %1467 = vmatpush1.msra.mxu0 0.0
  %1468 = vmatprep.subr.mxu0 0.0
  %1469 = vmatpush1.msra.mxu0 0.0
  %1470 = vmatprep.subr.mxu0 0.0
  %1471 = vmatpush1.msra.mxu0 0.0
  %1472 = vmatprep.subr.mxu0 0.0
  %1473 = vmatpush1.msra.mxu0 0.0
  %1474 = vmatprep.subr.mxu0 0.0
  %1475 = vmatpush1.msra.mxu0 0.0
  %1476 = vmatprep.subr.mxu0 0.0
  %1477 = vmatpush1.msra.mxu0 0.0
  %1478 = vmatprep.subr.mxu0 0.0
  %1479 = vmatpush1.msra.mxu0 0.0
  %1480 = vmatprep.subr.mxu0 0.0
  %1481 = vmatpush1.msra.mxu0 0.0
  %1482 = vmatprep.subr.mxu0 0.0
  %1483 = vmatpush1.msra.mxu0 0.0
  %1484 = vmatprep.subr.mxu0 0.0
  %1485 = vmatpush1.msra.mxu0 0.0
  %1486 = vmatprep.subr.mxu0 0.0
  %1487 = vmatpush1.msra.mxu0 0.0
  %1488 = vmatprep.subr.mxu0 0.0
  %1489 = vmatpush1.msra.mxu0 0.0
  %1490 = vmatprep.subr.mxu0 0.0
  %1491 = vmatpush1.msra.mxu0 %v1453
  %1492 = vmatprep.subr.mxu0 0.0
  %1493 = vmatpush1.msra.mxu0 %v1452
  %1494 = vmatprep.subr.mxu0 0.0
  %1495 = vmatpush1.msra.mxu0 %v1451
  %1496 = vmatprep.subr.mxu0 0.0
  %1497 = vmatpush1.msra.mxu0 %v1450
  %1498 = vmatprep.subr.mxu0 0.0
  %1499 = vmatpush2.msra.mxu0 0.0
  %1500 = vmatprep.subr.mxu0 0.0
  %1501 = vmatpush2.msra.mxu0 0.0
  %1502 = vmatprep.subr.mxu0 0.0
  %1503 = vmatpush2.msra.mxu0 0.0
  %1504 = vmatprep.subr.mxu0 0.0
  %1505 = vmatpush2.msra.mxu0 0.0
  %1506 = vmatprep.subr.mxu0 0.0
  %1507 = vmatpush2.msra.mxu0 0.0
  %1508 = vmatprep.subr.mxu0 0.0
  %1509 = vmatpush2.msra.mxu0 0.0
  %1510 = vmatprep.subr.mxu0 0.0
  %1511 = vmatpush2.msra.mxu0 0.0
  %1512 = vmatprep.subr.mxu0 0.0
  %1513 = vmatpush2.msra.mxu0 0.0
  %1514 = vmatprep.subr.mxu0 0.0
  %1515 = vmatpush2.msra.mxu0 0.0
  %1516 = vmatprep.subr.mxu0 0.0
  %1517 = vmatpush2.msra.mxu0 0.0
  %1518 = vmatprep.subr.mxu0 0.0
  %1519 = vmatpush2.msra.mxu0 0.0
  %1520 = vmatprep.subr.mxu0 0.0
  %1521 = vmatpush2.msra.mxu0 0.0
  %1522 = vmatprep.subr.mxu0 0.0
  %1523 = vmatpush2.msra.mxu0 0.0
  %1524 = vmatprep.subr.mxu0 0.0
  %1525 = vmatpush2.msra.mxu0 0.0
  %1526 = vmatprep.subr.mxu0 0.0
  %1527 = vmatpush2.msra.mxu0 0.0
  %1528 = vmatprep.subr.mxu0 0.0
  %1529 = vmatpush2.msra.mxu0 0.0
  %1530 = vmatprep.mubr.f32.mxu0 0.0
  %1531 = vmatmul.mubr.f32.gmra.mxu0 %v1464
  %v1532 = vpop.f32.mrf.mxu0
  %v1533 = vadd.f32 %v1459, %v1532
  %v1534 = vpop.f32.mrf.mxu0
  %1535 = vdwg.mxu0
  %v1536 = vmax.f32 %v1533, 0.0
  %v1537 = vld [vmem:[%s8] sm:$0xff]
  %v1538 = vld [vmem:[%s8 + $0x8] sm:$0xff]
  %v1539 = vld [vmem:[%s8 + $0x10] sm:$0xff]
  %v1540 = vld [vmem:[%s8 + $0x18] sm:$0xff]
  %v1541 = vld [vmem:[%s8 + $0x20] sm:$0xff]
  %v1542 = vld [vmem:[%s8 + $0x28] sm:$0xff]
  %v1543 = vld [vmem:[%s8 + $0x30] sm:$0xff]
  %v1544 = vld [vmem:[%s8 + $0x38] sm:$0xff]
  %v1545 = vld [vmem:[%s8 + $0x40] sm:$0xff]
  %v1546 = vld [vmem:[%s8 + $0x48] sm:$0xff]
  %v1547 = vld [vmem:[%s8 + $0x50] sm:$0xff]
  %v1548 = vld [vmem:[%s8 + $0x58] sm:$0xff]
  %v1549 = vld [vmem:[%s8 + $0x60] sm:$0xff]
  %v1550 = vld [vmem:[%s8 + $0x68] sm:$0xff]
  %v1551 = vld [vmem:[%s8 + $0x70] sm:$0xff]
  %v1552 = vld [vmem:[%s8 + $0x78] sm:$0xff]
  %v1553 = vld [vmem:[%s9] sm:$0x1]
  %v1555 = vlaneseq
  %v1556 = vshrl.u32 %v1555, 7
  %v1557 = vsub.s32 0, %v1556
  %v1558 = vrot.slane %v1553, %v1557
  %1560 = vmatprep.subr.mxu0 0.0
  %1561 = vmatpush1.msra.mxu0 %v1552
  %1562 = vmatprep.subr.mxu0 0.0
  %1563 = vmatpush1.msra.mxu0 %v1551
  %1564 = vmatprep.subr.mxu0 0.0
  %1565 = vmatpush1.msra.mxu0 %v1550
  %1566 = vmatprep.subr.mxu0 0.0
  %1567 = vmatpush1.msra.mxu0 %v1549
  %1568 = vmatprep.subr.mxu0 0.0
  %1569 = vmatpush1.msra.mxu0 %v1548
  %1570 = vmatprep.subr.mxu0 0.0
  %1571 = vmatpush1.msra.mxu0 %v1547
  %1572 = vmatprep.subr.mxu0 0.0
  %1573 = vmatpush1.msra.mxu0 %v1546
  %1574 = vmatprep.subr.mxu0 0.0
  %1575 = vmatpush1.msra.mxu0 %v1545
  %1576 = vmatprep.subr.mxu0 0.0
  %1577 = vmatpush1.msra.mxu0 %v1544
  %1578 = vmatprep.subr.mxu0 0.0
  %1579 = vmatpush1.msra.mxu0 %v1543
  %1580 = vmatprep.subr.mxu0 0.0
  %1581 = vmatpush1.msra.mxu0 %v1542
  %1582 = vmatprep.subr.mxu0 0.0
  %1583 = vmatpush1.msra.mxu0 %v1541
  %1584 = vmatprep.subr.mxu0 0.0
  %1585 = vmatpush1.msra.mxu0 %v1540
  %1586 = vmatprep.subr.mxu0 0.0
  %1587 = vmatpush1.msra.mxu0 %v1539
  %1588 = vmatprep.subr.mxu0 0.0
  %1589 = vmatpush1.msra.mxu0 %v1538
  %1590 = vmatprep.subr.mxu0 0.0
  %1591 = vmatpush1.msra.mxu0 %v1537
  %1592 = vmatprep.subr.mxu0 0.0
  %1593 = vmatpush2.msra.mxu0 0.0
  %1594 = vmatprep.subr.mxu0 0.0
  %1595 = vmatpush2.msra.mxu0 0.0
  %1596 = vmatprep.subr.mxu0 0.0
  %1597 = vmatpush2.msra.mxu0 0.0
  %1598 = vmatprep.subr.mxu0 0.0
  %1599 = vmatpush2.msra.mxu0 0.0
  %1600 = vmatprep.subr.mxu0 0.0
  %1601 = vmatpush2.msra.mxu0 0.0
  %1602 = vmatprep.subr.mxu0 0.0
  %1603 = vmatpush2.msra.mxu0 0.0
  %1604 = vmatprep.subr.mxu0 0.0
  %1605 = vmatpush2.msra.mxu0 0.0
  %1606 = vmatprep.subr.mxu0 0.0
  %1607 = vmatpush2.msra.mxu0 0.0
  %1608 = vmatprep.subr.mxu0 0.0
  %1609 = vmatpush2.msra.mxu0 0.0
  %1610 = vmatprep.subr.mxu0 0.0
  %1611 = vmatpush2.msra.mxu0 0.0
  %1612 = vmatprep.subr.mxu0 0.0
  %1613 = vmatpush2.msra.mxu0 0.0
  %1614 = vmatprep.subr.mxu0 0.0
  %1615 = vmatpush2.msra.mxu0 0.0
  %1616 = vmatprep.subr.mxu0 0.0
  %1617 = vmatpush2.msra.mxu0 0.0
  %1618 = vmatprep.subr.mxu0 0.0
  %1619 = vmatpush2.msra.mxu0 0.0
  %1620 = vmatprep.subr.mxu0 0.0
  %1621 = vmatpush2.msra.mxu0 0.0
  %1622 = vmatprep.subr.mxu0 0.0
  %1623 = vmatpush2.msra.mxu0 0.0
  %1624 = vmatprep.mubr.f32.mxu0 0.0
  %1625 = vmatmul.mubr.f32.gmra.mxu0 %v1536
  %v1626 = vpop.f32.mrf.mxu0
  %v1627 = vadd.f32 %v1558, %v1626
  %v1628 = vpop.f32.mrf.mxu0
  %1629 = vdwg.mxu0
  %1630 = vst [vmem:[%s10] sm:$0xff] %v1627
  // Predicated region
  $region42: #{robust_model_forward.1} parent=0 // pred_check
    _
  $region43: #{robust_model_forward.1} parent=0 // pred_check_branch
    %1632 = sbr.rel (0) target = $region45
  $region44: #{robust_model_forward.1} parent=0 // pred_region
    _
  $region45: #{robust_model_forward.1} parent=0 // pred_fallthru
    _
  // Predicated region
  $region46: #{robust_model_forward.1} parent=0 // pred_check
    _
  $region47: #{robust_model_forward.1} parent=0 // pred_check_branch
    %1634 = sbr.rel (0) target = $region49
  $region48: #{robust_model_forward.1} parent=0 // pred_region
    _
  $region49: #{robust_model_forward.1} parent=0 // pred_fallthru
    _

</llo_original>
